<compile_context>
chip_gen: v6e
topology: v6e:2x2x1
jax: 0.10.0
libtpu: 0.0.40
codegen_flags: <defaults>
</compile_context>

<pallas_src>
import functools

import jax
import jax.numpy as jnp
import numpy as np
from jax.experimental import pallas as pl
from jax.experimental.pallas import tpu as pltpu


# --------------------------------------------------------------------------
# Pallas kernel: fused [ x1 | ReLU(BN(1x1)) -> BN(dw3x3) -> ReLU(BN(1x1)) ]
# on (channels x flattened-spatial) tiles; all images of the block unrolled.
# --------------------------------------------------------------------------
def _inverted_residual_kernel(x_ref, w1_ref, b1_ref, wdw_ref, mask_ref,
                              w2_ref, b2_ref, o_ref, *, cb, W):
    """
    x_ref   : (nb, 2*Cb, HW) f32   full input block (both channel halves)
    w1_ref  : (Cb, Cb)       bf16  conv1 weight (Cout, Cin), BN1 scale folded
    b1_ref  : (Cb, 1)        f32   BN1 bias
    wdw_ref : (Cb, 9)        f32   depthwise taps * BN2 scale, col = 3*ky + kx
    mask_ref: (9, HW)        f32   zero-pad validity mask per tap / spatial pos
    w2_ref  : (Cb, Cb)       bf16  conv2 weight, BN3 scale folded
    b2_ref  : (Cb, 1)        f32   (w2f @ b2 + b3): BN2 bias pushed through conv2
    o_ref   : (nb, 2*Cb, HW) f32   [x1 ; branch2(x2)] (shuffle folded in wrapper)
    """
    nb = x_ref.shape[0]
    HW = x_ref.shape[2]

    for n in range(nb):                       # static unroll over images in block
        # ---- identity half: straight copy into the first Cb output rows ----
        o_ref[n, 0:cb, :] = x_ref[n, 0:cb, :].astype(o_ref.dtype)

        # ---- branch2 ----
        x2 = x_ref[n, cb:2 * cb, :].astype(jnp.bfloat16)

        # 1x1 conv #1 (+BN1 scale folded) + bias + ReLU: (Cb,Cb)@(Cb,HW) on MXU.
        t = jnp.dot(w1_ref[...], x2, preferred_element_type=jnp.float32)
        t = jnp.maximum(t + b1_ref[...], 0.0)

        # 3x3 depthwise conv (+BN2 scale folded into the taps).
        # Spatial shifts are lane rolls (XLU); the zero-pad boundary (both the
        # W edges and the H edges of the flattened H*W axis) is handled by the
        # per-tap lane masks.  Centre tap seeds the accumulator.
        acc = t * wdw_ref[:, 4:5]
        for r in range(9):
            if r == 4:
                continue
            ky, kx = r // 3, r % 3
            shift = ((1 - ky) * W + (1 - kx)) % HW
            sh = pltpu.roll(t, shift, axis=1)
            acc = acc + sh * wdw_ref[:, r:r + 1] * mask_ref[r:r + 1, :]

        # 1x1 conv #2 (+BN3 scale folded, BN2 bias pushed through) + ReLU.
        u = jnp.dot(w2_ref[...], acc.astype(jnp.bfloat16),
                    preferred_element_type=jnp.float32)
        u = jnp.maximum(u + b2_ref[...], 0.0)

        # concat(x1, branch2(x2)) along channels; channel_shuffle(groups=2) is
        # folded into the wrapper's output reshape/transpose.
        o_ref[n, cb:2 * cb, :] = u.astype(o_ref.dtype)


def _fused_block(x3, fp, *, cb, W, grid_n=1):
    """pallas_call wrapper.  x3 is (N, 2*Cb, H*W); returns (N, 2*Cb, H*W)."""
    N, C, HW = x3.shape
    assert N % grid_n == 0
    nb = N // grid_n

    # bf16 matmul operands (f32 accumulate inside the kernel).  These are tiny
    # (Cb x Cb), so the cast is negligible.
    w1b = fp['w1'].astype(jnp.bfloat16)
    w2b = fp['w2'].astype(jnp.bfloat16)

    kernel = functools.partial(_inverted_residual_kernel, cb=cb, W=W)

    def _const(a):
        nd = a.ndim
        return pl.BlockSpec(a.shape, lambda i, _nd=nd: (0,) * _nd)

    return pl.pallas_call(
        kernel,
        out_shape=jax.ShapeDtypeStruct((N, C, HW), jnp.float32),
        grid=(grid_n,),
        in_specs=[
            pl.BlockSpec((nb, C, HW), lambda i: (i, 0, 0)),   # activations
            _const(w1b), _const(fp['b1']), _const(fp['wdw']),
            _const(fp['mask']), _const(w2b), _const(fp['b2']),
        ],
        out_specs=pl.BlockSpec((nb, C, HW), lambda i: (i, 0, 0)),
        compiler_params=pltpu.CompilerParams(
            dimension_semantics=("parallel",)),
    )(x3, w1b, fp['b1'], fp['wdw'], fp['mask'], w2b, fp['b2'])


def inverted_residual_stride1(x_nchw, fp, *, grid_n=1):
    """InvertedResidual (stride=1) forward with folded params.  NCHW in/out.

    grid_n=1 folds the whole batch into one pallas step (best on single-TC
    v5e/v6e); grid_n=2 gives one image per step on a 'parallel' axis for v7x.
    """
    N, C, H, W = x_nchw.shape
    cb = C // 2
    x3 = x_nchw.reshape(N, C, H * W)            # free contiguous reshape, no transpose
    out3 = _fused_block(x3, fp, cb=cb, W=W, grid_n=grid_n)
    # concat + channel_shuffle(groups=2): (group g, channel k) -> channel 2k+g,
    # a static permutation realised by a single reshape/transpose HBM pass
    # (torch's channel_shuffle .contiguous() needs the same pass).
    out = out3.reshape(N, 2, cb, H, W)
    return jnp.transpose(out, (0, 2, 1, 3, 4)).reshape(N, C, H, W)


# --------------------------------------------------------------------------
# Parameter folding (done once, outside the kernel)
# --------------------------------------------------------------------------
def fold_params(p, H, W):
    """Fold BN scale/bias into the conv weights; build the zero-pad lane masks."""
    cb = p['w1'].shape[0]
    w1f = p['s1'][:, None] * p['w1']                     # BN1 scale -> conv1 rows
    w2f = p['s3'][:, None] * p['w2']                     # BN3 scale -> conv2 rows
    b1 = p['b1'][:, None]                                # (Cb, 1)
    # BN2 bias pushed through conv2: w2f @ (acc + b2) + b3 = w2f @ acc + bias2
    bias2 = (w2f @ p['b2'] + p['b3'])[:, None]           # (Cb, 1)
    wdw = (p['wdw'] * p['s2'][:, None, None]).reshape(cb, 9)   # (Cb, 9)

    # Per-tap validity masks over the flattened H*W axis (3x3, padding=1).
    pos = np.arange(H * W)
    h, w = pos // W, pos % W
    mask = np.zeros((9, H * W), np.float32)
    for i in range(3):
        for j in range(3):
            valid = ((h + i - 1 >= 0) & (h + i - 1 < H) &
                     (w + j - 1 >= 0) & (w + j - 1 < W))
            mask[3 * i + j] = valid.astype(np.float32)

    return dict(w1=jnp.asarray(w1f, jnp.float32),
                b1=jnp.asarray(b1, jnp.float32),
                wdw=jnp.asarray(wdw, jnp.float32),
                mask=jnp.asarray(mask),
                w2=jnp.asarray(w2f, jnp.float32),
                b2=jnp.asarray(bias2, jnp.float32))


# --------------------------------------------------------------------------
# Pure-JAX references
# --------------------------------------------------------------------------
def folded_reference(x_nchw, fp, *, compute_dtype=jnp.bfloat16, precision=None):
    """Mirror of the kernel math in plain JAX (same folded operand values)."""
    N, C, H, W = x_nchw.shape
    cb = C // 2
    HW = H * W
    x3 = x_nchw.reshape(N, C, HW)
    x1 = x3[:, :cb, :]
    x2 = x3[:, cb:, :].astype(compute_dtype)
    w1 = fp['w1'].astype(compute_dtype)
    w2 = fp['w2'].astype(compute_dtype)

    t = jnp.einsum('dc,ncp->ndp', w1, x2, precision=precision,
                   preferred_element_type=jnp.float32)
    t = jnp.maximum(t + fp['b1'][None], 0.0)

    acc = t * fp['wdw'][None, :, 4:5]
    for r in range(9):
        if r == 4:
            continue
        ky, kx = r // 3, r % 3
        shift = ((1 - ky) * W + (1 - kx)) % HW
        sh = jnp.roll(t, shift, axis=2)
        acc = acc + sh * fp['wdw'][None, :, r:r + 1] * fp['mask'][None, r:r + 1, :]

    u = jnp.einsum('dc,ncp->ndp', w2, acc.astype(compute_dtype),
                   precision=precision, preferred_element_type=jnp.float32)
    u = jnp.maximum(u + fp['b2'][None], 0.0)

    out3 = jnp.concatenate([x1, u], axis=1)
    out = out3.reshape(N, 2, cb, H, W)
    return jnp.transpose(out, (0, 2, 1, 3, 4)).reshape(N, C, H, W)


def module_reference(x_nchw, p, precision=None):
    """Faithful translation of InvertedResidual.forward (stride=1, unfused BN)."""
    N, C, H, W = x_nchw.shape
    cb = C // 2
    x1, x2 = x_nchw[:, :cb], x_nchw[:, cb:]
    s = lambda v: v[:, None, None]
    t = jnp.einsum('dc,nchw->ndhw', p['w1'], x2, precision=precision)
    t = jnp.maximum(t * s(p['s1']) + s(p['b1']), 0.0)
    tp = jnp.pad(t, ((0, 0), (0, 0), (1, 1), (1, 1)))
    acc = jnp.zeros_like(t)
    for i in range(3):
        for j in range(3):
            acc = acc + tp[:, :, i:i + H, j:j + W] * s(p['wdw'][:, i, j])
    acc = acc * s(p['s2']) + s(p['b2'])
    u = jnp.einsum('dc,nchw->ndhw', p['w2'], acc, precision=precision)
    u = jnp.maximum(u * s(p['s3']) + s(p['b3']), 0.0)
    out = jnp.concatenate([x1, u], axis=1)
    # channel_shuffle(out, 2)
    out = out.reshape(N, 2, cb, H, W)
    return jnp.transpose(out, (0, 2, 1, 3, 4)).reshape(N, C, H, W)


if __name__ == "__main__":
    # InvertedResidual(inp=32, oup=32, stride=1) -> branch_features = 16
    N, C, H, W = 2, 32, 16, 16
    cb = C // 2

    key = jax.random.PRNGKey(0)
    kx_, *kp = jax.random.split(key, 16)
    x = jax.random.normal(kx_, (N, C, H, W), jnp.float32)

    def bn_params(kg, kb, km, kv, c, eps=1e-5):
        gamma = 1.0 + 0.1 * jax.random.normal(kg, (c,), jnp.float32)
        beta = 0.1 * jax.random.normal(kb, (c,), jnp.float32)
        mean = 0.1 * jax.random.normal(km, (c,), jnp.float32)
        var = 0.5 + jax.random.uniform(kv, (c,), jnp.float32)
        scale = gamma / jnp.sqrt(var + eps)
        bias = beta - mean * scale
        return scale, bias

    params = {
        # 1x1 conv weights in torch layout (Cout, Cin) == weight[:, :, 0, 0]
        'w1': 0.1 * jax.random.normal(kp[0], (cb, cb), jnp.float32),
        # depthwise weight (C, kh, kw) == torch (C, 1, 3, 3) squeezed
        'wdw': 0.1 * jax.random.normal(kp[1], (cb, 3, 3), jnp.float32),
        'w2': 0.1 * jax.random.normal(kp[2], (cb, cb), jnp.float32),
    }
    params['s1'], params['b1'] = bn_params(kp[3], kp[4], kp[5], kp[6], cb)
    params['s2'], params['b2'] = bn_params(kp[7], kp[8], kp[9], kp[10], cb)
    params['s3'], params['b3'] = bn_params(kp[11], kp[12], kp[13], kp[14], cb)

    fp = fold_params(params, H, W)

    # Default path: whole batch in one block, grid=(1,) (v5e/v6e single-TC).
    fwd = jax.jit(functools.partial(inverted_residual_stride1, grid_n=1))
    out = jax.block_until_ready(fwd(x, fp))
    assert out.shape == (N, C, H, W), out.shape

    # v7x-style path: one image per grid step on a 'parallel' axis.
    fwd_p = jax.jit(functools.partial(inverted_residual_stride1, grid_n=2))
    out_p = jax.block_until_ready(fwd_p(x, fp))
    assert jnp.allclose(out, out_p, atol=1e-6, rtol=1e-6)

    # Gate 1: Pallas kernel vs a pure-JAX mirror of the exact same bf16/f32
    # folded math (identical operand values -> tight tolerance).
    mirror = jax.block_until_ready(folded_reference(x, fp))
    err1 = float(jnp.max(jnp.abs(out - mirror)))
    assert jnp.allclose(out, mirror, atol=1e-4, rtol=1e-4), err1

    # Gate 2: folded math (f32, HIGHEST precision) vs the faithful unfused module
    # translation (HIGHEST) -> validates the BN folding / mask-shift / shuffle algebra.
    hp = jax.lax.Precision.HIGHEST
    a = folded_reference(x, fp, compute_dtype=jnp.float32, precision=hp)
    b = module_reference(x, params, precision=hp)
    err2 = float(jnp.max(jnp.abs(a - b)))
    assert jnp.allclose(a, b, atol=1e-4, rtol=1e-4), err2

    # Gate 3: end-to-end sanity vs the unfused f32 reference (loose tolerance:
    # the kernel uses single-pass bf16 MXU operands by design).
    ref = jax.block_until_ready(module_reference(x, params))
    err3 = float(jnp.max(jnp.abs(out - ref)))
    assert jnp.allclose(out, ref, atol=5e-2, rtol=5e-2), err3

    print("KERNEL_OK")
</pallas_src>

<mosaic_0001>
module attributes {stable_mosaic.version = 11 : i64} {
  func.func @_inverted_residual_kernel(%arg0: i32, %arg1: memref<2x32x256xf32, #tpu.memory_space<vmem>>, %arg2: memref<16x16xbf16, #tpu.memory_space<vmem>>, %arg3: memref<16x1xf32, #tpu.memory_space<vmem>>, %arg4: memref<16x9xf32, #tpu.memory_space<vmem>>, %arg5: memref<9x256xf32, #tpu.memory_space<vmem>>, %arg6: memref<16x16xbf16, #tpu.memory_space<vmem>>, %arg7: memref<16x1xf32, #tpu.memory_space<vmem>>, %arg8: memref<2x32x256xf32, #tpu.memory_space<vmem>>) attributes {dimension_semantics = [#tpu.dimension_semantics<parallel>], iteration_bounds = array<i64: 1>, scalar_prefetch = 0 : i64, scratch_operands = 0 : i64, tpu.core_type = #tpu.core_type<tc>, window_params = [{transform_indices = @transform_0, window_bounds = array<i64: 2, 32, 256>}, {pipeline_mode = #tpu.pipeline_mode<synchronous>, transform_indices = @transform_1, window_bounds = array<i64: 16, 16>}, {pipeline_mode = #tpu.pipeline_mode<synchronous>, transform_indices = @transform_2, window_bounds = array<i64: 16, 1>}, {pipeline_mode = #tpu.pipeline_mode<synchronous>, transform_indices = @transform_3, window_bounds = array<i64: 16, 9>}, {pipeline_mode = #tpu.pipeline_mode<synchronous>, transform_indices = @transform_4, window_bounds = array<i64: 9, 256>}, {pipeline_mode = #tpu.pipeline_mode<synchronous>, transform_indices = @transform_5, window_bounds = array<i64: 16, 16>}, {pipeline_mode = #tpu.pipeline_mode<synchronous>, transform_indices = @transform_6, window_bounds = array<i64: 16, 1>}, {transform_indices = @transform_7, window_bounds = array<i64: 2, 32, 256>}]} {
    %c0 = arith.constant 0 : index
    %c0_0 = arith.constant 0 : index
    %c0_1 = arith.constant 0 : index
    %0 = vector.load %arg1[%c0, %c0_0, %c0_1] : memref<2x32x256xf32, #tpu.memory_space<vmem>>, vector<1x16x256xf32>
    %1 = vector.shape_cast %0 : vector<1x16x256xf32> to vector<16x256xf32>
    %c0_2 = arith.constant 0 : index
    %c0_3 = arith.constant 0 : index
    %c0_4 = arith.constant 0 : index
    %2 = vector.load %arg8[%c0_2, %c0_3, %c0_4] : memref<2x32x256xf32, #tpu.memory_space<vmem>>, vector<1x16x256xf32>
    %3 = vector.shape_cast %2 : vector<1x16x256xf32> to vector<16x256xf32>
    %4 = vector.shape_cast %1 : vector<16x256xf32> to vector<1x16x256xf32>
    tpu.vector_store %arg8[%c0_2, %c0_3, %c0_4], %4 {strides = array<i32>} : memref<2x32x256xf32, #tpu.memory_space<vmem>>, vector<1x16x256xf32>,
    %c0_5 = arith.constant 0 : index
    %c16 = arith.constant 16 : index
    %c0_6 = arith.constant 0 : index
    %5 = vector.load %arg1[%c0_5, %c16, %c0_6] : memref<2x32x256xf32, #tpu.memory_space<vmem>>, vector<1x16x256xf32>
    %6 = vector.shape_cast %5 : vector<1x16x256xf32> to vector<16x256xf32>
    %7 = arith.truncf %6 : vector<16x256xf32> to vector<16x256xbf16>
    %c0_7 = arith.constant 0 : index
    %c0_8 = arith.constant 0 : index
    %8 = vector.load %arg2[%c0_7, %c0_8] : memref<16x16xbf16, #tpu.memory_space<vmem>>, vector<16x16xbf16>
    %cst = arith.constant dense<0.000000e+00> : vector<16x256xf32>
    %9 = tpu.matmul %8, %7, %cst {dimension_numbers = #tpu.dot_dimension_numbers<[1], [0], [0], [1], [0, 0, 1, 1], [], []>} : vector<16x16xbf16>, vector<16x256xbf16>, vector<16x256xf32> -> vector<16x256xf32>
    %c0_9 = arith.constant 0 : index
    %c0_10 = arith.constant 0 : index
    %10 = vector.load %arg3[%c0_9, %c0_10] : memref<16x1xf32, #tpu.memory_space<vmem>>, vector<16x1xf32>
    %11 = vector.broadcast %10 : vector<16x1xf32> to vector<16x256xf32>
    %12 = arith.addf %9, %11 : vector<16x256xf32>
    %cst_11 = arith.constant 0.000000e+00 : f32
    %13 = vector.broadcast %cst_11 : f32 to vector<16x256xf32>
    %14 = arith.maximumf %12, %13 : vector<16x256xf32>
    %c0_12 = arith.constant 0 : index
    %c4 = arith.constant 4 : index
    %15 = vector.load %arg4[%c0_12, %c4] : memref<16x9xf32, #tpu.memory_space<vmem>>, vector<16x1xf32>
    %16 = vector.broadcast %15 : vector<16x1xf32> to vector<16x256xf32>
    %17 = arith.mulf %14, %16 : vector<16x256xf32>
    %c17_i32 = arith.constant 17 : i32
    %18 = tpu.dynamic_rotate %14 by %c17_i32 dim 1 : vector<16x256xf32>, i32 -> vector<16x256xf32>
    %c0_13 = arith.constant 0 : index
    %c0_14 = arith.constant 0 : index
    %19 = vector.load %arg4[%c0_13, %c0_14] : memref<16x9xf32, #tpu.memory_space<vmem>>, vector<16x1xf32>
    %20 = vector.broadcast %19 : vector<16x1xf32> to vector<16x256xf32>
    %21 = arith.mulf %18, %20 : vector<16x256xf32>
    %c0_15 = arith.constant 0 : index
    %c0_16 = arith.constant 0 : index
    %22 = vector.load %arg5[%c0_15, %c0_16] : memref<9x256xf32, #tpu.memory_space<vmem>>, vector<1x256xf32>
    %23 = vector.broadcast %22 : vector<1x256xf32> to vector<16x256xf32>
    %24 = arith.mulf %21, %23 : vector<16x256xf32>
    %25 = arith.addf %17, %24 : vector<16x256xf32>
    %c16_i32 = arith.constant 16 : i32
    %26 = tpu.dynamic_rotate %14 by %c16_i32 dim 1 : vector<16x256xf32>, i32 -> vector<16x256xf32>
    %c0_17 = arith.constant 0 : index
    %c1 = arith.constant 1 : index
    %27 = vector.load %arg4[%c0_17, %c1] : memref<16x9xf32, #tpu.memory_space<vmem>>, vector<16x1xf32>
    %28 = vector.broadcast %27 : vector<16x1xf32> to vector<16x256xf32>
    %29 = arith.mulf %26, %28 : vector<16x256xf32>
    %c1_18 = arith.constant 1 : index
    %c0_19 = arith.constant 0 : index
    %30 = vector.load %arg5[%c1_18, %c0_19] : memref<9x256xf32, #tpu.memory_space<vmem>>, vector<1x256xf32>
    %31 = vector.broadcast %30 : vector<1x256xf32> to vector<16x256xf32>
    %32 = arith.mulf %29, %31 : vector<16x256xf32>
    %33 = arith.addf %25, %32 : vector<16x256xf32>
    %c15_i32 = arith.constant 15 : i32
    %34 = tpu.dynamic_rotate %14 by %c15_i32 dim 1 : vector<16x256xf32>, i32 -> vector<16x256xf32>
    %c0_20 = arith.constant 0 : index
    %c2 = arith.constant 2 : index
    %35 = vector.load %arg4[%c0_20, %c2] : memref<16x9xf32, #tpu.memory_space<vmem>>, vector<16x1xf32>
    %36 = vector.broadcast %35 : vector<16x1xf32> to vector<16x256xf32>
    %37 = arith.mulf %34, %36 : vector<16x256xf32>
    %c2_21 = arith.constant 2 : index
    %c0_22 = arith.constant 0 : index
    %38 = vector.load %arg5[%c2_21, %c0_22] : memref<9x256xf32, #tpu.memory_space<vmem>>, vector<1x256xf32>
    %39 = vector.broadcast %38 : vector<1x256xf32> to vector<16x256xf32>
    %40 = arith.mulf %37, %39 : vector<16x256xf32>
    %41 = arith.addf %33, %40 : vector<16x256xf32>
    %c1_i32 = arith.constant 1 : i32
    %42 = tpu.dynamic_rotate %14 by %c1_i32 dim 1 : vector<16x256xf32>, i32 -> vector<16x256xf32>
    %c0_23 = arith.constant 0 : index
    %c3 = arith.constant 3 : index
    %43 = vector.load %arg4[%c0_23, %c3] : memref<16x9xf32, #tpu.memory_space<vmem>>, vector<16x1xf32>
    %44 = vector.broadcast %43 : vector<16x1xf32> to vector<16x256xf32>
    %45 = arith.mulf %42, %44 : vector<16x256xf32>
    %c3_24 = arith.constant 3 : index
    %c0_25 = arith.constant 0 : index
    %46 = vector.load %arg5[%c3_24, %c0_25] : memref<9x256xf32, #tpu.memory_space<vmem>>, vector<1x256xf32>
    %47 = vector.broadcast %46 : vector<1x256xf32> to vector<16x256xf32>
    %48 = arith.mulf %45, %47 : vector<16x256xf32>
    %49 = arith.addf %41, %48 : vector<16x256xf32>
    %c255_i32 = arith.constant 255 : i32
    %50 = tpu.dynamic_rotate %14 by %c255_i32 dim 1 : vector<16x256xf32>, i32 -> vector<16x256xf32>
    %c0_26 = arith.constant 0 : index
    %c5 = arith.constant 5 : index
    %51 = vector.load %arg4[%c0_26, %c5] : memref<16x9xf32, #tpu.memory_space<vmem>>, vector<16x1xf32>
    %52 = vector.broadcast %51 : vector<16x1xf32> to vector<16x256xf32>
    %53 = arith.mulf %50, %52 : vector<16x256xf32>
    %c5_27 = arith.constant 5 : index
    %c0_28 = arith.constant 0 : index
    %54 = vector.load %arg5[%c5_27, %c0_28] : memref<9x256xf32, #tpu.memory_space<vmem>>, vector<1x256xf32>
    %55 = vector.broadcast %54 : vector<1x256xf32> to vector<16x256xf32>
    %56 = arith.mulf %53, %55 : vector<16x256xf32>
    %57 = arith.addf %49, %56 : vector<16x256xf32>
    %c241_i32 = arith.constant 241 : i32
    %58 = tpu.dynamic_rotate %14 by %c241_i32 dim 1 : vector<16x256xf32>, i32 -> vector<16x256xf32>
    %c0_29 = arith.constant 0 : index
    %c6 = arith.constant 6 : index
    %59 = vector.load %arg4[%c0_29, %c6] : memref<16x9xf32, #tpu.memory_space<vmem>>, vector<16x1xf32>
    %60 = vector.broadcast %59 : vector<16x1xf32> to vector<16x256xf32>
    %61 = arith.mulf %58, %60 : vector<16x256xf32>
    %c6_30 = arith.constant 6 : index
    %c0_31 = arith.constant 0 : index
    %62 = vector.load %arg5[%c6_30, %c0_31] : memref<9x256xf32, #tpu.memory_space<vmem>>, vector<1x256xf32>
    %63 = vector.broadcast %62 : vector<1x256xf32> to vector<16x256xf32>
    %64 = arith.mulf %61, %63 : vector<16x256xf32>
    %65 = arith.addf %57, %64 : vector<16x256xf32>
    %c240_i32 = arith.constant 240 : i32
    %66 = tpu.dynamic_rotate %14 by %c240_i32 dim 1 : vector<16x256xf32>, i32 -> vector<16x256xf32>
    %c0_32 = arith.constant 0 : index
    %c7 = arith.constant 7 : index
    %67 = vector.load %arg4[%c0_32, %c7] : memref<16x9xf32, #tpu.memory_space<vmem>>, vector<16x1xf32>
    %68 = vector.broadcast %67 : vector<16x1xf32> to vector<16x256xf32>
    %69 = arith.mulf %66, %68 : vector<16x256xf32>
    %c7_33 = arith.constant 7 : index
    %c0_34 = arith.constant 0 : index
    %70 = vector.load %arg5[%c7_33, %c0_34] : memref<9x256xf32, #tpu.memory_space<vmem>>, vector<1x256xf32>
    %71 = vector.broadcast %70 : vector<1x256xf32> to vector<16x256xf32>
    %72 = arith.mulf %69, %71 : vector<16x256xf32>
    %73 = arith.addf %65, %72 : vector<16x256xf32>
    %c239_i32 = arith.constant 239 : i32
    %74 = tpu.dynamic_rotate %14 by %c239_i32 dim 1 : vector<16x256xf32>, i32 -> vector<16x256xf32>
    %c0_35 = arith.constant 0 : index
    %c8 = arith.constant 8 : index
    %75 = vector.load %arg4[%c0_35, %c8] : memref<16x9xf32, #tpu.memory_space<vmem>>, vector<16x1xf32>
    %76 = vector.broadcast %75 : vector<16x1xf32> to vector<16x256xf32>
    %77 = arith.mulf %74, %76 : vector<16x256xf32>
    %c8_36 = arith.constant 8 : index
    %c0_37 = arith.constant 0 : index
    %78 = vector.load %arg5[%c8_36, %c0_37] : memref<9x256xf32, #tpu.memory_space<vmem>>, vector<1x256xf32>
    %79 = vector.broadcast %78 : vector<1x256xf32> to vector<16x256xf32>
    %80 = arith.mulf %77, %79 : vector<16x256xf32>
    %81 = arith.addf %73, %80 : vector<16x256xf32>
    %c0_38 = arith.constant 0 : index
    %c0_39 = arith.constant 0 : index
    %82 = vector.load %arg6[%c0_38, %c0_39] : memref<16x16xbf16, #tpu.memory_space<vmem>>, vector<16x16xbf16>
    %83 = arith.truncf %81 : vector<16x256xf32> to vector<16x256xbf16>
    %cst_40 = arith.constant dense<0.000000e+00> : vector<16x256xf32>
    %84 = tpu.matmul %82, %83, %cst_40 {dimension_numbers = #tpu.dot_dimension_numbers<[1], [0], [0], [1], [0, 0, 1, 1], [], []>} : vector<16x16xbf16>, vector<16x256xbf16>, vector<16x256xf32> -> vector<16x256xf32>
    %c0_41 = arith.constant 0 : index
    %c0_42 = arith.constant 0 : index
    %85 = vector.load %arg7[%c0_41, %c0_42] : memref<16x1xf32, #tpu.memory_space<vmem>>, vector<16x1xf32>
    %86 = vector.broadcast %85 : vector<16x1xf32> to vector<16x256xf32>
    %87 = arith.addf %84, %86 : vector<16x256xf32>
    %cst_43 = arith.constant 0.000000e+00 : f32
    %88 = vector.broadcast %cst_43 : f32 to vector<16x256xf32>
    %89 = arith.maximumf %87, %88 : vector<16x256xf32>
    %c0_44 = arith.constant 0 : index
    %c16_45 = arith.constant 16 : index
    %c0_46 = arith.constant 0 : index
    %90 = vector.load %arg8[%c0_44, %c16_45, %c0_46] : memref<2x32x256xf32, #tpu.memory_space<vmem>>, vector<1x16x256xf32>
    %91 = vector.shape_cast %90 : vector<1x16x256xf32> to vector<16x256xf32>
    %92 = vector.shape_cast %89 : vector<16x256xf32> to vector<1x16x256xf32>
    tpu.vector_store %arg8[%c0_44, %c16_45, %c0_46], %92 {strides = array<i32>} : memref<2x32x256xf32, #tpu.memory_space<vmem>>, vector<1x16x256xf32>,
    %c1_47 = arith.constant 1 : index
    %c0_48 = arith.constant 0 : index
    %c0_49 = arith.constant 0 : index
    %93 = vector.load %arg1[%c1_47, %c0_48, %c0_49] : memref<2x32x256xf32, #tpu.memory_space<vmem>>, vector<1x16x256xf32>
    %94 = vector.shape_cast %93 : vector<1x16x256xf32> to vector<16x256xf32>
    %c1_50 = arith.constant 1 : index
    %c0_51 = arith.constant 0 : index
    %c0_52 = arith.constant 0 : index
    %95 = vector.load %arg8[%c1_50, %c0_51, %c0_52] : memref<2x32x256xf32, #tpu.memory_space<vmem>>, vector<1x16x256xf32>
    %96 = vector.shape_cast %95 : vector<1x16x256xf32> to vector<16x256xf32>
    %97 = vector.shape_cast %94 : vector<16x256xf32> to vector<1x16x256xf32>
    tpu.vector_store %arg8[%c1_50, %c0_51, %c0_52], %97 {strides = array<i32>} : memref<2x32x256xf32, #tpu.memory_space<vmem>>, vector<1x16x256xf32>,
    %c1_53 = arith.constant 1 : index
    %c16_54 = arith.constant 16 : index
    %c0_55 = arith.constant 0 : index
    %98 = vector.load %arg1[%c1_53, %c16_54, %c0_55] : memref<2x32x256xf32, #tpu.memory_space<vmem>>, vector<1x16x256xf32>
    %99 = vector.shape_cast %98 : vector<1x16x256xf32> to vector<16x256xf32>
    %100 = arith.truncf %99 : vector<16x256xf32> to vector<16x256xbf16>
    %c0_56 = arith.constant 0 : index
    %c0_57 = arith.constant 0 : index
    %101 = vector.load %arg2[%c0_56, %c0_57] : memref<16x16xbf16, #tpu.memory_space<vmem>>, vector<16x16xbf16>
    %cst_58 = arith.constant dense<0.000000e+00> : vector<16x256xf32>
    %102 = tpu.matmul %101, %100, %cst_58 {dimension_numbers = #tpu.dot_dimension_numbers<[1], [0], [0], [1], [0, 0, 1, 1], [], []>} : vector<16x16xbf16>, vector<16x256xbf16>, vector<16x256xf32> -> vector<16x256xf32>
    %c0_59 = arith.constant 0 : index
    %c0_60 = arith.constant 0 : index
    %103 = vector.load %arg3[%c0_59, %c0_60] : memref<16x1xf32, #tpu.memory_space<vmem>>, vector<16x1xf32>
    %104 = vector.broadcast %103 : vector<16x1xf32> to vector<16x256xf32>
    %105 = arith.addf %102, %104 : vector<16x256xf32>
    %cst_61 = arith.constant 0.000000e+00 : f32
    %106 = vector.broadcast %cst_61 : f32 to vector<16x256xf32>
    %107 = arith.maximumf %105, %106 : vector<16x256xf32>
    %c0_62 = arith.constant 0 : index
    %c4_63 = arith.constant 4 : index
    %108 = vector.load %arg4[%c0_62, %c4_63] : memref<16x9xf32, #tpu.memory_space<vmem>>, vector<16x1xf32>
    %109 = vector.broadcast %108 : vector<16x1xf32> to vector<16x256xf32>
    %110 = arith.mulf %107, %109 : vector<16x256xf32>
    %c17_i32_64 = arith.constant 17 : i32
    %111 = tpu.dynamic_rotate %107 by %c17_i32_64 dim 1 : vector<16x256xf32>, i32 -> vector<16x256xf32>
    %c0_65 = arith.constant 0 : index
    %c0_66 = arith.constant 0 : index
    %112 = vector.load %arg4[%c0_65, %c0_66] : memref<16x9xf32, #tpu.memory_space<vmem>>, vector<16x1xf32>
    %113 = vector.broadcast %112 : vector<16x1xf32> to vector<16x256xf32>
    %114 = arith.mulf %111, %113 : vector<16x256xf32>
    %c0_67 = arith.constant 0 : index
    %c0_68 = arith.constant 0 : index
    %115 = vector.load %arg5[%c0_67, %c0_68] : memref<9x256xf32, #tpu.memory_space<vmem>>, vector<1x256xf32>
    %116 = vector.broadcast %115 : vector<1x256xf32> to vector<16x256xf32>
    %117 = arith.mulf %114, %116 : vector<16x256xf32>
    %118 = arith.addf %110, %117 : vector<16x256xf32>
    %c16_i32_69 = arith.constant 16 : i32
    %119 = tpu.dynamic_rotate %107 by %c16_i32_69 dim 1 : vector<16x256xf32>, i32 -> vector<16x256xf32>
    %c0_70 = arith.constant 0 : index
    %c1_71 = arith.constant 1 : index
    %120 = vector.load %arg4[%c0_70, %c1_71] : memref<16x9xf32, #tpu.memory_space<vmem>>, vector<16x1xf32>
    %121 = vector.broadcast %120 : vector<16x1xf32> to vector<16x256xf32>
    %122 = arith.mulf %119, %121 : vector<16x256xf32>
    %c1_72 = arith.constant 1 : index
    %c0_73 = arith.constant 0 : index
    %123 = vector.load %arg5[%c1_72, %c0_73] : memref<9x256xf32, #tpu.memory_space<vmem>>, vector<1x256xf32>
    %124 = vector.broadcast %123 : vector<1x256xf32> to vector<16x256xf32>
    %125 = arith.mulf %122, %124 : vector<16x256xf32>
    %126 = arith.addf %118, %125 : vector<16x256xf32>
    %c15_i32_74 = arith.constant 15 : i32
    %127 = tpu.dynamic_rotate %107 by %c15_i32_74 dim 1 : vector<16x256xf32>, i32 -> vector<16x256xf32>
    %c0_75 = arith.constant 0 : index
    %c2_76 = arith.constant 2 : index
    %128 = vector.load %arg4[%c0_75, %c2_76] : memref<16x9xf32, #tpu.memory_space<vmem>>, vector<16x1xf32>
    %129 = vector.broadcast %128 : vector<16x1xf32> to vector<16x256xf32>
    %130 = arith.mulf %127, %129 : vector<16x256xf32>
    %c2_77 = arith.constant 2 : index
    %c0_78 = arith.constant 0 : index
    %131 = vector.load %arg5[%c2_77, %c0_78] : memref<9x256xf32, #tpu.memory_space<vmem>>, vector<1x256xf32>
    %132 = vector.broadcast %131 : vector<1x256xf32> to vector<16x256xf32>
    %133 = arith.mulf %130, %132 : vector<16x256xf32>
    %134 = arith.addf %126, %133 : vector<16x256xf32>
    %c1_i32_79 = arith.constant 1 : i32
    %135 = tpu.dynamic_rotate %107 by %c1_i32_79 dim 1 : vector<16x256xf32>, i32 -> vector<16x256xf32>
    %c0_80 = arith.constant 0 : index
    %c3_81 = arith.constant 3 : index
    %136 = vector.load %arg4[%c0_80, %c3_81] : memref<16x9xf32, #tpu.memory_space<vmem>>, vector<16x1xf32>
    %137 = vector.broadcast %136 : vector<16x1xf32> to vector<16x256xf32>
    %138 = arith.mulf %135, %137 : vector<16x256xf32>
    %c3_82 = arith.constant 3 : index
    %c0_83 = arith.constant 0 : index
    %139 = vector.load %arg5[%c3_82, %c0_83] : memref<9x256xf32, #tpu.memory_space<vmem>>, vector<1x256xf32>
    %140 = vector.broadcast %139 : vector<1x256xf32> to vector<16x256xf32>
    %141 = arith.mulf %138, %140 : vector<16x256xf32>
    %142 = arith.addf %134, %141 : vector<16x256xf32>
    %c255_i32_84 = arith.constant 255 : i32
    %143 = tpu.dynamic_rotate %107 by %c255_i32_84 dim 1 : vector<16x256xf32>, i32 -> vector<16x256xf32>
    %c0_85 = arith.constant 0 : index
    %c5_86 = arith.constant 5 : index
    %144 = vector.load %arg4[%c0_85, %c5_86] : memref<16x9xf32, #tpu.memory_space<vmem>>, vector<16x1xf32>
    %145 = vector.broadcast %144 : vector<16x1xf32> to vector<16x256xf32>
    %146 = arith.mulf %143, %145 : vector<16x256xf32>
    %c5_87 = arith.constant 5 : index
    %c0_88 = arith.constant 0 : index
    %147 = vector.load %arg5[%c5_87, %c0_88] : memref<9x256xf32, #tpu.memory_space<vmem>>, vector<1x256xf32>
    %148 = vector.broadcast %147 : vector<1x256xf32> to vector<16x256xf32>
    %149 = arith.mulf %146, %148 : vector<16x256xf32>
    %150 = arith.addf %142, %149 : vector<16x256xf32>
    %c241_i32_89 = arith.constant 241 : i32
    %151 = tpu.dynamic_rotate %107 by %c241_i32_89 dim 1 : vector<16x256xf32>, i32 -> vector<16x256xf32>
    %c0_90 = arith.constant 0 : index
    %c6_91 = arith.constant 6 : index
    %152 = vector.load %arg4[%c0_90, %c6_91] : memref<16x9xf32, #tpu.memory_space<vmem>>, vector<16x1xf32>
    %153 = vector.broadcast %152 : vector<16x1xf32> to vector<16x256xf32>
    %154 = arith.mulf %151, %153 : vector<16x256xf32>
    %c6_92 = arith.constant 6 : index
    %c0_93 = arith.constant 0 : index
    %155 = vector.load %arg5[%c6_92, %c0_93] : memref<9x256xf32, #tpu.memory_space<vmem>>, vector<1x256xf32>
    %156 = vector.broadcast %155 : vector<1x256xf32> to vector<16x256xf32>
    %157 = arith.mulf %154, %156 : vector<16x256xf32>
    %158 = arith.addf %150, %157 : vector<16x256xf32>
    %c240_i32_94 = arith.constant 240 : i32
    %159 = tpu.dynamic_rotate %107 by %c240_i32_94 dim 1 : vector<16x256xf32>, i32 -> vector<16x256xf32>
    %c0_95 = arith.constant 0 : index
    %c7_96 = arith.constant 7 : index
    %160 = vector.load %arg4[%c0_95, %c7_96] : memref<16x9xf32, #tpu.memory_space<vmem>>, vector<16x1xf32>
    %161 = vector.broadcast %160 : vector<16x1xf32> to vector<16x256xf32>
    %162 = arith.mulf %159, %161 : vector<16x256xf32>
    %c7_97 = arith.constant 7 : index
    %c0_98 = arith.constant 0 : index
    %163 = vector.load %arg5[%c7_97, %c0_98] : memref<9x256xf32, #tpu.memory_space<vmem>>, vector<1x256xf32>
    %164 = vector.broadcast %163 : vector<1x256xf32> to vector<16x256xf32>
    %165 = arith.mulf %162, %164 : vector<16x256xf32>
    %166 = arith.addf %158, %165 : vector<16x256xf32>
    %c239_i32_99 = arith.constant 239 : i32
    %167 = tpu.dynamic_rotate %107 by %c239_i32_99 dim 1 : vector<16x256xf32>, i32 -> vector<16x256xf32>
    %c0_100 = arith.constant 0 : index
    %c8_101 = arith.constant 8 : index
    %168 = vector.load %arg4[%c0_100, %c8_101] : memref<16x9xf32, #tpu.memory_space<vmem>>, vector<16x1xf32>
    %169 = vector.broadcast %168 : vector<16x1xf32> to vector<16x256xf32>
    %170 = arith.mulf %167, %169 : vector<16x256xf32>
    %c8_102 = arith.constant 8 : index
    %c0_103 = arith.constant 0 : index
    %171 = vector.load %arg5[%c8_102, %c0_103] : memref<9x256xf32, #tpu.memory_space<vmem>>, vector<1x256xf32>
    %172 = vector.broadcast %171 : vector<1x256xf32> to vector<16x256xf32>
    %173 = arith.mulf %170, %172 : vector<16x256xf32>
    %174 = arith.addf %166, %173 : vector<16x256xf32>
    %c0_104 = arith.constant 0 : index
    %c0_105 = arith.constant 0 : index
    %175 = vector.load %arg6[%c0_104, %c0_105] : memref<16x16xbf16, #tpu.memory_space<vmem>>, vector<16x16xbf16>
    %176 = arith.truncf %174 : vector<16x256xf32> to vector<16x256xbf16>
    %cst_106 = arith.constant dense<0.000000e+00> : vector<16x256xf32>
    %177 = tpu.matmul %175, %176, %cst_106 {dimension_numbers = #tpu.dot_dimension_numbers<[1], [0], [0], [1], [0, 0, 1, 1], [], []>} : vector<16x16xbf16>, vector<16x256xbf16>, vector<16x256xf32> -> vector<16x256xf32>
    %c0_107 = arith.constant 0 : index
    %c0_108 = arith.constant 0 : index
    %178 = vector.load %arg7[%c0_107, %c0_108] : memref<16x1xf32, #tpu.memory_space<vmem>>, vector<16x1xf32>
    %179 = vector.broadcast %178 : vector<16x1xf32> to vector<16x256xf32>
    %180 = arith.addf %177, %179 : vector<16x256xf32>
    %cst_109 = arith.constant 0.000000e+00 : f32
    %181 = vector.broadcast %cst_109 : f32 to vector<16x256xf32>
    %182 = arith.maximumf %180, %181 : vector<16x256xf32>
    %c1_110 = arith.constant 1 : index
    %c16_111 = arith.constant 16 : index
    %c0_112 = arith.constant 0 : index
    %183 = vector.load %arg8[%c1_110, %c16_111, %c0_112] : memref<2x32x256xf32, #tpu.memory_space<vmem>>, vector<1x16x256xf32>
    %184 = vector.shape_cast %183 : vector<1x16x256xf32> to vector<16x256xf32>
    %185 = vector.shape_cast %182 : vector<16x256xf32> to vector<1x16x256xf32>
    tpu.vector_store %arg8[%c1_110, %c16_111, %c0_112], %185 {strides = array<i32>} : memref<2x32x256xf32, #tpu.memory_space<vmem>>, vector<1x16x256xf32>,
    return
  }
  func.func @transform_0(%arg0: i32) -> (i32, i32, i32) {
    %c0_i32 = arith.constant 0 : i32
    %c0_i32_0 = arith.constant 0 : i32
    %c0_i32_1 = arith.constant 0 : i32
    return %arg0, %c0_i32, %c0_i32_0 : i32, i32, i32
  }
  func.func @transform_1(%arg0: i32) -> (i32, i32) {
    %c0_i32 = arith.constant 0 : i32
    %c0_i32_0 = arith.constant 0 : i32
    %c0_i32_1 = arith.constant 0 : i32
    return %c0_i32, %c0_i32_0 : i32, i32
  }
  func.func @transform_2(%arg0: i32) -> (i32, i32) {
    %c0_i32 = arith.constant 0 : i32
    %c0_i32_0 = arith.constant 0 : i32
    %c0_i32_1 = arith.constant 0 : i32
    return %c0_i32, %c0_i32_0 : i32, i32
  }
  func.func @transform_3(%arg0: i32) -> (i32, i32) {
    %c0_i32 = arith.constant 0 : i32
    %c0_i32_0 = arith.constant 0 : i32
    %c0_i32_1 = arith.constant 0 : i32
    return %c0_i32, %c0_i32_0 : i32, i32
  }
  func.func @transform_4(%arg0: i32) -> (i32, i32) {
    %c0_i32 = arith.constant 0 : i32
    %c0_i32_0 = arith.constant 0 : i32
    %c0_i32_1 = arith.constant 0 : i32
    return %c0_i32, %c0_i32_0 : i32, i32
  }
  func.func @transform_5(%arg0: i32) -> (i32, i32) {
    %c0_i32 = arith.constant 0 : i32
    %c0_i32_0 = arith.constant 0 : i32
    %c0_i32_1 = arith.constant 0 : i32
    return %c0_i32, %c0_i32_0 : i32, i32
  }
  func.func @transform_6(%arg0: i32) -> (i32, i32) {
    %c0_i32 = arith.constant 0 : i32
    %c0_i32_0 = arith.constant 0 : i32
    %c0_i32_1 = arith.constant 0 : i32
    return %c0_i32, %c0_i32_0 : i32, i32
  }
  func.func @transform_7(%arg0: i32) -> (i32, i32, i32) {
    %c0_i32 = arith.constant 0 : i32
    %c0_i32_0 = arith.constant 0 : i32
    %c0_i32_1 = arith.constant 0 : i32
    return %arg0, %c0_i32, %c0_i32_0 : i32, i32, i32
  }
}

</mosaic_0001>

<llo_original>
// kernel: inverted_residual_stride1.1
$region0: #{inverted_residual_stride1.1}
  #allocation0 [shape = 'u32[]', space=smem, size = 0x4, offset = 0x4, fixed_abs, tag = 'smem constant byte address 0x4 - core index']
  #allocation1 [shape = 'u32[144,128]{1,0:T(1,128)}', space=vmem, size = 0x12000, scoped, tag = 'internal scratch']
  %s0 = inlined_call_operand.vmem [shape: f32[2,32,256], index: 0, kind: input, shape index: {}]
  %s1 = inlined_call_operand.vmem [shape: bf16[16,16], index: 1, kind: input, shape index: {}]
  %s2 = inlined_call_operand.vmem [shape: f32[16,1], index: 2, kind: input, shape index: {}]
  %s3 = inlined_call_operand.vmem [shape: f32[16,9], index: 3, kind: input, shape index: {}]
  %s4 = inlined_call_operand.vmem [shape: f32[9,256], index: 4, kind: input, shape index: {}]
  %s5 = inlined_call_operand.vmem [shape: bf16[16,16], index: 5, kind: input, shape index: {}]
  %s6 = inlined_call_operand.vmem [shape: f32[16,1], index: 6, kind: input, shape index: {}]
  %s7 = inlined_call_operand.vmem [shape: f32[2,32,256], index: 7, kind: output, shape index: {}]
  %s8 = sld [smem:[#allocation0]]
  $region38: #{inverted_residual_stride1.1} parent=0
    _
  %s10 = ssub.s32 1, %s8
  %s11 = scalar_select 0, %s10, %s8
  // Predicated region
  $region2: #{inverted_residual_stride1.1} parent=0 // pred_check
    _
  $region3: #{inverted_residual_stride1.1} parent=0 // pred_check_branch
    %13 = sbr.rel (0) target = $region5
  $region4: #{inverted_residual_stride1.1} parent=0 // pred_region
    _
  $region5: #{inverted_residual_stride1.1} parent=0 // pred_fallthru
    _
  // Predicated region
  $region6: #{inverted_residual_stride1.1} parent=0 // pred_check
    _
  $region7: #{inverted_residual_stride1.1} parent=0 // pred_check_branch
    %15 = sbr.rel (0) target = $region9
  $region8: #{inverted_residual_stride1.1} parent=0 // pred_region
    _
  $region9: #{inverted_residual_stride1.1} parent=0 // pred_fallthru
    _
  // Predicated region
  $region10: #{inverted_residual_stride1.1} parent=0 // pred_check
    _
  $region11: #{inverted_residual_stride1.1} parent=0 // pred_check_branch
    %17 = sbr.rel (0) target = $region13
  $region12: #{inverted_residual_stride1.1} parent=0 // pred_region
    _
  $region13: #{inverted_residual_stride1.1} parent=0 // pred_fallthru
    _
  // Predicated region
  $region14: #{inverted_residual_stride1.1} parent=0 // pred_check
    _
  $region15: #{inverted_residual_stride1.1} parent=0 // pred_check_branch
    %19 = sbr.rel (0) target = $region17
  $region16: #{inverted_residual_stride1.1} parent=0 // pred_region
    _
  $region17: #{inverted_residual_stride1.1} parent=0 // pred_fallthru
    _
  // Predicated region
  $region18: #{inverted_residual_stride1.1} parent=0 // pred_check
    _
  $region19: #{inverted_residual_stride1.1} parent=0 // pred_check_branch
    %21 = sbr.rel (0) target = $region21
  $region20: #{inverted_residual_stride1.1} parent=0 // pred_region
    _
  $region21: #{inverted_residual_stride1.1} parent=0 // pred_fallthru
    _
  // Predicated region
  $region22: #{inverted_residual_stride1.1} parent=0 // pred_check
    _
  $region23: #{inverted_residual_stride1.1} parent=0 // pred_check_branch
    %23 = sbr.rel (0) target = $region25
  $region24: #{inverted_residual_stride1.1} parent=0 // pred_region
    _
  $region25: #{inverted_residual_stride1.1} parent=0 // pred_fallthru
    _
  // Predicated region
  $region26: #{inverted_residual_stride1.1} parent=0 // pred_check
    _
  $region27: #{inverted_residual_stride1.1} parent=0 // pred_check_branch
    %25 = sbr.rel (0) target = $region29
  $region28: #{inverted_residual_stride1.1} parent=0 // pred_region
    _
  $region29: #{inverted_residual_stride1.1} parent=0 // pred_fallthru
    _
  %v27 = vld [vmem:[%s0] sm:$0xff]
  %v28 = vld [vmem:[%s0 + $0x8] sm:$0xff]
  %v29 = vld [vmem:[%s0 + $0x10] sm:$0xff]
  %v30 = vld [vmem:[%s0 + $0x18] sm:$0xff]
  %31 = vst [vmem:[%s7] sm:$0xff] %v27
  %32 = vst [vmem:[%s7 + $0x8] sm:$0xff] %v28
  %33 = vst [vmem:[%s7 + $0x10] sm:$0xff] %v29
  %34 = vst [vmem:[%s7 + $0x18] sm:$0xff] %v30
  %v35 = vld [vmem:[%s0 + $0x20] sm:$0xff]
  %v36 = vld [vmem:[%s0 + $0x28] sm:$0xff]
  %v37 = vld [vmem:[%s0 + $0x30] sm:$0xff]
  %v38 = vld [vmem:[%s0 + $0x38] sm:$0xff]
  %v39 = vpack.c.bf16 %v37, %v35
  %v40 = vpack.c.bf16 %v38, %v36
  %v41 = vld [vmem:[%s1] sm:$0xf]
  %v42 = vld [vmem:[%s1 + $0x4] sm:$0xf]
  %v43 = vld [vmem:[%s2] sm:$0xff]
  %v44 = vld [vmem:[%s2 + $0x8] sm:$0xff]
  %46 = vset.pattern.permute.xlu0 0
  %47 = vperm.xlu0 %46, %v43
  %v48 = vpop.permute.xlu0 %47
  %51 = vset.pattern.permute.xlu0 0
  %52 = vperm.xlu0 %51, %v44
  %v53 = vpop.permute.xlu0 %52
  %v57 = vunpack.c.l.b16 %v41
  %v58 = vunpack.c.l.b16 %v42
  %v59 = vpack.c.b16 %v58, %v57
  %vm60 = vcmask 130048
  %v62 = vsel %vm60, %v59, 0
  %64 = vmatprep.subr.bf16.mxu0 0
  %65 = vmatpush1.bf16.msra.mxu0 0
  %66 = vmatprep.subr.bf16.mxu0 0
  %67 = vmatpush1.bf16.msra.mxu0 0
  %68 = vmatprep.subr.bf16.mxu0 0
  %69 = vmatpush1.bf16.msra.mxu0 0
  %70 = vmatprep.subr.bf16.mxu0 0
  %71 = vmatpush1.bf16.msra.mxu0 0
  %72 = vmatprep.subr.bf16.mxu0 0
  %73 = vmatpush1.bf16.msra.mxu0 0
  %74 = vmatprep.subr.bf16.mxu0 0
  %75 = vmatpush1.bf16.msra.mxu0 0
  %76 = vmatprep.subr.bf16.mxu0 0
  %77 = vmatpush1.bf16.msra.mxu0 0
  %78 = vmatprep.subr.bf16.mxu0 %v40
  %79 = vmatpush1.bf16.msra.mxu0 %v39
  %80 = vmatprep.subr.bf16.mxu0 0
  %81 = vmatpush2.bf16.msra.mxu0 0
  %82 = vmatprep.subr.bf16.mxu0 0
  %83 = vmatpush2.bf16.msra.mxu0 0
  %84 = vmatprep.subr.bf16.mxu0 0
  %85 = vmatpush2.bf16.msra.mxu0 0
  %86 = vmatprep.subr.bf16.mxu0 0
  %87 = vmatpush2.bf16.msra.mxu0 0
  %88 = vmatprep.subr.bf16.mxu0 0
  %89 = vmatpush2.bf16.msra.mxu0 0
  %90 = vmatprep.subr.bf16.mxu0 0
  %91 = vmatpush2.bf16.msra.mxu0 0
  %92 = vmatprep.subr.bf16.mxu0 0
  %93 = vmatpush2.bf16.msra.mxu0 0
  %94 = vmatprep.subr.bf16.mxu0 0
  %95 = vmatpush2.bf16.msra.mxu0 0
  %96 = vmatprep.mubr.bf16.mxu0 0
  %97 = vmatmul.mubr.bf16.gmra.mxu0 %v62
  %v98 = vpop.f32.mrf.mxu0
  %v99 = vadd.f32 %v48, %v98
  %v100 = vpop.f32.mrf.mxu0
  %v101 = vadd.f32 %v48, %v100
  %v102 = vpop.f32.mrf.mxu0
  %v103 = vadd.f32 %v53, %v102
  %v104 = vpop.f32.mrf.mxu0
  %v105 = vadd.f32 %v53, %v104
  %106 = vdwg.mxu0
  %v107 = vmax.f32 %v99, 0.0
  %v108 = vmax.f32 %v101, 0.0
  %v109 = vmax.f32 %v103, 0.0
  %v110 = vmax.f32 %v105, 0.0
  %v111 = vld [vmem:[%s3] sm:$0xff]
  %v112 = vld [vmem:[%s3 + $0x8] sm:$0xff]
  %114 = vset.pattern.permute.xlu0 4
  %115 = vperm.xlu0 %114, %v111
  %v116 = vpop.permute.xlu0 %115
  %119 = vset.pattern.permute.xlu0 4
  %120 = vperm.xlu0 %119, %v112
  %v121 = vpop.permute.xlu0 %120
  %v123 = vmul.f32 %v107, %v116
  %v124 = vmul.f32 %v108, %v116
  %v125 = vmul.f32 %v109, %v121
  %v126 = vmul.f32 %v110, %v121
  %127 = vrot.lane.b32.xlu0 %v107, 17
  %v128 = vpop.permute.xlu0 %127
  %129 = vrot.lane.b32.xlu0 %v109, 17
  %v130 = vpop.permute.xlu0 %129
  %131 = vrot.lane.b32.xlu0 %v108, 17
  %v132 = vpop.permute.xlu0 %131
  %133 = vrot.lane.b32.xlu0 %v110, 17
  %v134 = vpop.permute.xlu0 %133
  %v135 = vlaneseq
  %v136 = vand.u32 %v135, 127
  %vm137 = vcmp.lt.s32.totalorder %v136, 17
  %v138 = vsel %vm137, %v128, %v132
  %v139 = vsel %vm137, %v130, %v134
  %v140 = vsel %vm137, %v132, %v128
  %v141 = vsel %vm137, %v134, %v130
  %142 = vset.pattern.permute.xlu0 0
  %143 = vperm.xlu0 %142, %v111
  %v144 = vpop.permute.xlu0 %143
  %146 = vset.pattern.permute.xlu0 0
  %147 = vperm.xlu0 %146, %v112
  %v148 = vpop.permute.xlu0 %147
  %v150 = vmul.f32 %v140, %v144
  %v151 = vmul.f32 %v138, %v144
  %v152 = vmul.f32 %v141, %v148
  %v153 = vmul.f32 %v139, %v148
  %v154 = vld [vmem:[%s4] ss:$8 sm:$0x3]
  %v156 = vlaneseq
  %v157 = vshrl.u32 %v156, 7
  %v158 = vsub.s32 0, %v157
  %v159 = vrot.slane %v154, %v158
  %v160 = vlaneseq
  %v161 = vshrl.u32 %v160, 7
  %v162 = vsub.s32 1, %v161
  %v163 = vrot.slane %v154, %v162
  %v166 = vmul.f32 %v150, %v159
  %v167 = vmul.f32 %v151, %v163
  %v168 = vmul.f32 %v152, %v159
  %v169 = vmul.f32 %v153, %v163
  %v170 = vadd.f32 %v123, %v166
  %v171 = vadd.f32 %v124, %v167
  %v172 = vadd.f32 %v125, %v168
  %v173 = vadd.f32 %v126, %v169
  %174 = vrot.lane.b32.xlu0 %v107, 16
  %v175 = vpop.permute.xlu0 %174
  %176 = vrot.lane.b32.xlu0 %v109, 16
  %v177 = vpop.permute.xlu0 %176
  %178 = vrot.lane.b32.xlu0 %v108, 16
  %v179 = vpop.permute.xlu0 %178
  %180 = vrot.lane.b32.xlu0 %v110, 16
  %v181 = vpop.permute.xlu0 %180
  %vm182 = vcmp.lt.s32.totalorder %v136, 16
  %v183 = vsel %vm182, %v175, %v179
  %v184 = vsel %vm182, %v177, %v181
  %v185 = vsel %vm182, %v179, %v175
  %v186 = vsel %vm182, %v181, %v177
  %187 = vset.pattern.permute.xlu0 1
  %188 = vperm.xlu0 %187, %v111
  %v189 = vpop.permute.xlu0 %188
  %191 = vset.pattern.permute.xlu0 1
  %192 = vperm.xlu0 %191, %v112
  %v193 = vpop.permute.xlu0 %192
  %v195 = vmul.f32 %v185, %v189
  %v196 = vmul.f32 %v183, %v189
  %v197 = vmul.f32 %v186, %v193
  %v198 = vmul.f32 %v184, %v193
  %s199 = scalar_lea.vmem %s4, 1
  %v200 = vld [vmem:[%s199] ss:$8 sm:$0x3]
  %v202 = vlaneseq
  %v203 = vshrl.u32 %v202, 7
  %v204 = vsub.s32 0, %v203
  %v205 = vrot.slane %v200, %v204
  %v206 = vlaneseq
  %v207 = vshrl.u32 %v206, 7
  %v208 = vsub.s32 1, %v207
  %v209 = vrot.slane %v200, %v208
  %v212 = vmul.f32 %v195, %v205
  %v213 = vmul.f32 %v196, %v209
  %v214 = vmul.f32 %v197, %v205
  %v215 = vmul.f32 %v198, %v209
  %v216 = vadd.f32 %v170, %v212
  %v217 = vadd.f32 %v171, %v213
  %v218 = vadd.f32 %v172, %v214
  %v219 = vadd.f32 %v173, %v215
  %220 = vrot.lane.b32.xlu0 %v107, 15
  %v221 = vpop.permute.xlu0 %220
  %222 = vrot.lane.b32.xlu0 %v109, 15
  %v223 = vpop.permute.xlu0 %222
  %224 = vrot.lane.b32.xlu0 %v108, 15
  %v225 = vpop.permute.xlu0 %224
  %226 = vrot.lane.b32.xlu0 %v110, 15
  %v227 = vpop.permute.xlu0 %226
  %vm228 = vcmp.lt.s32.totalorder %v136, 15
  %v229 = vsel %vm228, %v221, %v225
  %v230 = vsel %vm228, %v223, %v227
  %v231 = vsel %vm228, %v225, %v221
  %v232 = vsel %vm228, %v227, %v223
  %233 = vset.pattern.permute.xlu0 2
  %234 = vperm.xlu0 %233, %v111
  %v235 = vpop.permute.xlu0 %234
  %237 = vset.pattern.permute.xlu0 2
  %238 = vperm.xlu0 %237, %v112
  %v239 = vpop.permute.xlu0 %238
  %v241 = vmul.f32 %v231, %v235
  %v242 = vmul.f32 %v229, %v235
  %v243 = vmul.f32 %v232, %v239
  %v244 = vmul.f32 %v230, %v239
  %s245 = scalar_lea.vmem %s4, 2
  %v246 = vld [vmem:[%s245] ss:$8 sm:$0x3]
  %v248 = vlaneseq
  %v249 = vshrl.u32 %v248, 7
  %v250 = vsub.s32 0, %v249
  %v251 = vrot.slane %v246, %v250
  %v252 = vlaneseq
  %v253 = vshrl.u32 %v252, 7
  %v254 = vsub.s32 1, %v253
  %v255 = vrot.slane %v246, %v254
  %v258 = vmul.f32 %v241, %v251
  %v259 = vmul.f32 %v242, %v255
  %v260 = vmul.f32 %v243, %v251
  %v261 = vmul.f32 %v244, %v255
  %v262 = vadd.f32 %v216, %v258
  %v263 = vadd.f32 %v217, %v259
  %v264 = vadd.f32 %v218, %v260
  %v265 = vadd.f32 %v219, %v261
  %266 = vrot.lane.b32.xlu0 %v107, 1
  %v267 = vpop.permute.xlu0 %266
  %268 = vrot.lane.b32.xlu0 %v109, 1
  %v269 = vpop.permute.xlu0 %268
  %270 = vrot.lane.b32.xlu0 %v108, 1
  %v271 = vpop.permute.xlu0 %270
  %272 = vrot.lane.b32.xlu0 %v110, 1
  %v273 = vpop.permute.xlu0 %272
  %vm274 = vcmp.lt.s32.totalorder %v136, 1
  %v275 = vsel %vm274, %v267, %v271
  %v276 = vsel %vm274, %v269, %v273
  %v277 = vsel %vm274, %v271, %v267
  %v278 = vsel %vm274, %v273, %v269
  %279 = vset.pattern.permute.xlu0 3
  %280 = vperm.xlu0 %279, %v111
  %v281 = vpop.permute.xlu0 %280
  %283 = vset.pattern.permute.xlu0 3
  %284 = vperm.xlu0 %283, %v112
  %v285 = vpop.permute.xlu0 %284
  %v287 = vmul.f32 %v277, %v281
  %v288 = vmul.f32 %v275, %v281
  %v289 = vmul.f32 %v278, %v285
  %v290 = vmul.f32 %v276, %v285
  %s291 = scalar_lea.vmem %s4, 3
  %v292 = vld [vmem:[%s291] ss:$8 sm:$0x3]
  %v294 = vlaneseq
  %v295 = vshrl.u32 %v294, 7
  %v296 = vsub.s32 0, %v295
  %v297 = vrot.slane %v292, %v296
  %v298 = vlaneseq
  %v299 = vshrl.u32 %v298, 7
  %v300 = vsub.s32 1, %v299
  %v301 = vrot.slane %v292, %v300
  %v304 = vmul.f32 %v287, %v297
  %v305 = vmul.f32 %v288, %v301
  %v306 = vmul.f32 %v289, %v297
  %v307 = vmul.f32 %v290, %v301
  %v308 = vadd.f32 %v262, %v304
  %v309 = vadd.f32 %v263, %v305
  %v310 = vadd.f32 %v264, %v306
  %v311 = vadd.f32 %v265, %v307
  %312 = vrot.lane.b32.xlu0 %v107, 127
  %v313 = vpop.permute.xlu0 %312
  %314 = vrot.lane.b32.xlu0 %v109, 127
  %v315 = vpop.permute.xlu0 %314
  %316 = vrot.lane.b32.xlu0 %v108, 127
  %v317 = vpop.permute.xlu0 %316
  %318 = vrot.lane.b32.xlu0 %v110, 127
  %v319 = vpop.permute.xlu0 %318
  %vm320 = vcmp.lt.s32.totalorder %v136, 127
  %v321 = vsel %vm320, %v313, %v317
  %v322 = vsel %vm320, %v315, %v319
  %v323 = vsel %vm320, %v317, %v313
  %v324 = vsel %vm320, %v319, %v315
  %325 = vset.pattern.permute.xlu0 5
  %326 = vperm.xlu0 %325, %v111
  %v327 = vpop.permute.xlu0 %326
  %329 = vset.pattern.permute.xlu0 5
  %330 = vperm.xlu0 %329, %v112
  %v331 = vpop.permute.xlu0 %330
  %v333 = vmul.f32 %v321, %v327
  %v334 = vmul.f32 %v323, %v327
  %v335 = vmul.f32 %v322, %v331
  %v336 = vmul.f32 %v324, %v331
  %s337 = scalar_lea.vmem %s4, 5
  %v338 = vld [vmem:[%s337] ss:$8 sm:$0x3]
  %v340 = vlaneseq
  %v341 = vshrl.u32 %v340, 7
  %v342 = vsub.s32 0, %v341
  %v343 = vrot.slane %v338, %v342
  %v344 = vlaneseq
  %v345 = vshrl.u32 %v344, 7
  %v346 = vsub.s32 1, %v345
  %v347 = vrot.slane %v338, %v346
  %v350 = vmul.f32 %v333, %v343
  %v351 = vmul.f32 %v334, %v347
  %v352 = vmul.f32 %v335, %v343
  %v353 = vmul.f32 %v336, %v347
  %v354 = vadd.f32 %v308, %v350
  %v355 = vadd.f32 %v309, %v351
  %v356 = vadd.f32 %v310, %v352
  %v357 = vadd.f32 %v311, %v353
  %358 = vrot.lane.b32.xlu0 %v107, 113
  %v359 = vpop.permute.xlu0 %358
  %360 = vrot.lane.b32.xlu0 %v109, 113
  %v361 = vpop.permute.xlu0 %360
  %362 = vrot.lane.b32.xlu0 %v108, 113
  %v363 = vpop.permute.xlu0 %362
  %364 = vrot.lane.b32.xlu0 %v110, 113
  %v365 = vpop.permute.xlu0 %364
  %vm366 = vcmp.lt.s32.totalorder %v136, 113
  %v367 = vsel %vm366, %v359, %v363
  %v368 = vsel %vm366, %v361, %v365
  %v369 = vsel %vm366, %v363, %v359
  %v370 = vsel %vm366, %v365, %v361
  %371 = vset.pattern.permute.xlu0 6
  %372 = vperm.xlu0 %371, %v111
  %v373 = vpop.permute.xlu0 %372
  %375 = vset.pattern.permute.xlu0 6
  %376 = vperm.xlu0 %375, %v112
  %v377 = vpop.permute.xlu0 %376
  %v379 = vmul.f32 %v367, %v373
  %v380 = vmul.f32 %v369, %v373
  %v381 = vmul.f32 %v368, %v377
  %v382 = vmul.f32 %v370, %v377
  %s383 = scalar_lea.vmem %s4, 6
  %v384 = vld [vmem:[%s383] ss:$8 sm:$0x3]
  %v386 = vlaneseq
  %v387 = vshrl.u32 %v386, 7
  %v388 = vsub.s32 0, %v387
  %v389 = vrot.slane %v384, %v388
  %v390 = vlaneseq
  %v391 = vshrl.u32 %v390, 7
  %v392 = vsub.s32 1, %v391
  %v393 = vrot.slane %v384, %v392
  %v396 = vmul.f32 %v379, %v389
  %v397 = vmul.f32 %v380, %v393
  %v398 = vmul.f32 %v381, %v389
  %v399 = vmul.f32 %v382, %v393
  %v400 = vadd.f32 %v354, %v396
  %v401 = vadd.f32 %v355, %v397
  %v402 = vadd.f32 %v356, %v398
  %v403 = vadd.f32 %v357, %v399
  %404 = vrot.lane.b32.xlu0 %v107, 112
  %v405 = vpop.permute.xlu0 %404
  %406 = vrot.lane.b32.xlu0 %v109, 112
  %v407 = vpop.permute.xlu0 %406
  %408 = vrot.lane.b32.xlu0 %v108, 112
  %v409 = vpop.permute.xlu0 %408
  %410 = vrot.lane.b32.xlu0 %v110, 112
  %v411 = vpop.permute.xlu0 %410
  %vm412 = vcmp.lt.s32.totalorder %v136, 112
  %v413 = vsel %vm412, %v405, %v409
  %v414 = vsel %vm412, %v407, %v411
  %v415 = vsel %vm412, %v409, %v405
  %v416 = vsel %vm412, %v411, %v407
  %417 = vset.pattern.permute.xlu0 7
  %418 = vperm.xlu0 %417, %v111
  %v419 = vpop.permute.xlu0 %418
  %421 = vset.pattern.permute.xlu0 7
  %422 = vperm.xlu0 %421, %v112
  %v423 = vpop.permute.xlu0 %422
  %v425 = vmul.f32 %v413, %v419
  %v426 = vmul.f32 %v415, %v419
  %v427 = vmul.f32 %v414, %v423
  %v428 = vmul.f32 %v416, %v423
  %s429 = scalar_lea.vmem %s4, 7
  %v430 = vld [vmem:[%s429] ss:$8 sm:$0x3]
  %v432 = vlaneseq
  %v433 = vshrl.u32 %v432, 7
  %v434 = vsub.s32 0, %v433
  %v435 = vrot.slane %v430, %v434
  %v436 = vlaneseq
  %v437 = vshrl.u32 %v436, 7
  %v438 = vsub.s32 1, %v437
  %v439 = vrot.slane %v430, %v438
  %v442 = vmul.f32 %v425, %v435
  %v443 = vmul.f32 %v426, %v439
  %v444 = vmul.f32 %v427, %v435
  %v445 = vmul.f32 %v428, %v439
  %v446 = vadd.f32 %v400, %v442
  %v447 = vadd.f32 %v401, %v443
  %v448 = vadd.f32 %v402, %v444
  %v449 = vadd.f32 %v403, %v445
  %450 = vrot.lane.b32.xlu0 %v107, 111
  %v451 = vpop.permute.xlu0 %450
  %452 = vrot.lane.b32.xlu0 %v109, 111
  %v453 = vpop.permute.xlu0 %452
  %454 = vrot.lane.b32.xlu0 %v108, 111
  %v455 = vpop.permute.xlu0 %454
  %456 = vrot.lane.b32.xlu0 %v110, 111
  %v457 = vpop.permute.xlu0 %456
  %vm458 = vcmp.lt.s32.totalorder %v136, 111
  %v459 = vsel %vm458, %v451, %v455
  %v460 = vsel %vm458, %v453, %v457
  %v461 = vsel %vm458, %v455, %v451
  %v462 = vsel %vm458, %v457, %v453
  %463 = vset.pattern.permute.xlu0 8
  %464 = vperm.xlu0 %463, %v111
  %v465 = vpop.permute.xlu0 %464
  %467 = vset.pattern.permute.xlu0 8
  %468 = vperm.xlu0 %467, %v112
  %v469 = vpop.permute.xlu0 %468
  %v471 = vmul.f32 %v459, %v465
  %v472 = vmul.f32 %v461, %v465
  %v473 = vmul.f32 %v460, %v469
  %v474 = vmul.f32 %v462, %v469
  %s475 = scalar_lea.vmem %s4, 16
  %v476 = vld [vmem:[%s475] ss:$8 sm:$0x3]
  %v478 = vlaneseq
  %v479 = vshrl.u32 %v478, 7
  %v480 = vsub.s32 0, %v479
  %v481 = vrot.slane %v476, %v480
  %v482 = vlaneseq
  %v483 = vshrl.u32 %v482, 7
  %v484 = vsub.s32 1, %v483
  %v485 = vrot.slane %v476, %v484
  %v488 = vmul.f32 %v471, %v481
  %v489 = vmul.f32 %v472, %v485
  %v490 = vmul.f32 %v473, %v481
  %v491 = vmul.f32 %v474, %v485
  %v492 = vadd.f32 %v446, %v488
  %v493 = vadd.f32 %v447, %v489
  %v494 = vadd.f32 %v448, %v490
  %v495 = vadd.f32 %v449, %v491
  %v496 = vld [vmem:[%s5] sm:$0xf]
  %v497 = vld [vmem:[%s5 + $0x4] sm:$0xf]
  %v498 = vpack.c.bf16 %v494, %v492
  %v499 = vpack.c.bf16 %v495, %v493
  %v500 = vld [vmem:[%s6] sm:$0xff]
  %v501 = vld [vmem:[%s6 + $0x8] sm:$0xff]
  %503 = vset.pattern.permute.xlu0 0
  %504 = vperm.xlu0 %503, %v500
  %v505 = vpop.permute.xlu0 %504
  %508 = vset.pattern.permute.xlu0 0
  %509 = vperm.xlu0 %508, %v501
  %v510 = vpop.permute.xlu0 %509
  %v514 = vunpack.c.l.b16 %v496
  %v515 = vunpack.c.l.b16 %v497
  %v516 = vpack.c.b16 %v515, %v514
  %v518 = vsel %vm60, %v516, 0
  %520 = vmatprep.subr.bf16.mxu0 0
  %521 = vmatpush1.bf16.msra.mxu0 0
  %522 = vmatprep.subr.bf16.mxu0 0
  %523 = vmatpush1.bf16.msra.mxu0 0
  %524 = vmatprep.subr.bf16.mxu0 0
  %525 = vmatpush1.bf16.msra.mxu0 0
  %526 = vmatprep.subr.bf16.mxu0 0
  %527 = vmatpush1.bf16.msra.mxu0 0
  %528 = vmatprep.subr.bf16.mxu0 0
  %529 = vmatpush1.bf16.msra.mxu0 0
  %530 = vmatprep.subr.bf16.mxu0 0
  %531 = vmatpush1.bf16.msra.mxu0 0
  %532 = vmatprep.subr.bf16.mxu0 0
  %533 = vmatpush1.bf16.msra.mxu0 0
  %534 = vmatprep.subr.bf16.mxu0 %v499
  %535 = vmatpush1.bf16.msra.mxu0 %v498
  %536 = vmatprep.subr.bf16.mxu0 0
  %537 = vmatpush2.bf16.msra.mxu0 0
  %538 = vmatprep.subr.bf16.mxu0 0
  %539 = vmatpush2.bf16.msra.mxu0 0
  %540 = vmatprep.subr.bf16.mxu0 0
  %541 = vmatpush2.bf16.msra.mxu0 0
  %542 = vmatprep.subr.bf16.mxu0 0
  %543 = vmatpush2.bf16.msra.mxu0 0
  %544 = vmatprep.subr.bf16.mxu0 0
  %545 = vmatpush2.bf16.msra.mxu0 0
  %546 = vmatprep.subr.bf16.mxu0 0
  %547 = vmatpush2.bf16.msra.mxu0 0
  %548 = vmatprep.subr.bf16.mxu0 0
  %549 = vmatpush2.bf16.msra.mxu0 0
  %550 = vmatprep.subr.bf16.mxu0 0
  %551 = vmatpush2.bf16.msra.mxu0 0
  %552 = vmatprep.mubr.bf16.mxu0 0
  %553 = vmatmul.mubr.bf16.gmra.mxu0 %v518
  %v554 = vpop.f32.mrf.mxu0
  %v555 = vadd.f32 %v505, %v554
  %v556 = vpop.f32.mrf.mxu0
  %v557 = vadd.f32 %v505, %v556
  %v558 = vpop.f32.mrf.mxu0
  %v559 = vadd.f32 %v510, %v558
  %v560 = vpop.f32.mrf.mxu0
  %v561 = vadd.f32 %v510, %v560
  %562 = vdwg.mxu0
  %v563 = vmax.f32 %v555, 0.0
  %v564 = vmax.f32 %v557, 0.0
  %v565 = vmax.f32 %v559, 0.0
  %v566 = vmax.f32 %v561, 0.0
  %567 = vst [vmem:[%s7 + $0x20] sm:$0xff] %v563
  %568 = vst [vmem:[%s7 + $0x28] sm:$0xff] %v564
  %569 = vst [vmem:[%s7 + $0x30] sm:$0xff] %v565
  %570 = vst [vmem:[%s7 + $0x38] sm:$0xff] %v566
  %s571 = scalar_lea.vmem %s0, 64
  %v572 = vld [vmem:[%s571] sm:$0xff]
  %v573 = vld [vmem:[%s571 + $0x8] sm:$0xff]
  %v574 = vld [vmem:[%s571 + $0x10] sm:$0xff]
  %v575 = vld [vmem:[%s571 + $0x18] sm:$0xff]
  %s576 = scalar_lea.vmem %s7, 64
  %577 = vst [vmem:[%s576] sm:$0xff] %v572
  %578 = vst [vmem:[%s576 + $0x8] sm:$0xff] %v573
  %579 = vst [vmem:[%s576 + $0x10] sm:$0xff] %v574
  %580 = vst [vmem:[%s576 + $0x18] sm:$0xff] %v575
  %v581 = vld [vmem:[%s571 + $0x20] sm:$0xff]
  %v582 = vld [vmem:[%s571 + $0x28] sm:$0xff]
  %v583 = vld [vmem:[%s571 + $0x30] sm:$0xff]
  %v584 = vld [vmem:[%s571 + $0x38] sm:$0xff]
  %v585 = vpack.c.bf16 %v583, %v581
  %v586 = vpack.c.bf16 %v584, %v582
  %v587 = vld [vmem:[%s1] sm:$0xf]
  %v588 = vld [vmem:[%s1 + $0x4] sm:$0xf]
  %v589 = vld [vmem:[%s2] sm:$0xff]
  %v590 = vld [vmem:[%s2 + $0x8] sm:$0xff]
  %592 = vset.pattern.permute.xlu0 0
  %593 = vperm.xlu0 %592, %v589
  %v594 = vpop.permute.xlu0 %593
  %597 = vset.pattern.permute.xlu0 0
  %598 = vperm.xlu0 %597, %v590
  %v599 = vpop.permute.xlu0 %598
  %v603 = vunpack.c.l.b16 %v587
  %v604 = vunpack.c.l.b16 %v588
  %v605 = vpack.c.b16 %v604, %v603
  %v607 = vsel %vm60, %v605, 0
  %609 = vmatprep.subr.bf16.mxu0 0
  %610 = vmatpush1.bf16.msra.mxu0 0
  %611 = vmatprep.subr.bf16.mxu0 0
  %612 = vmatpush1.bf16.msra.mxu0 0
  %613 = vmatprep.subr.bf16.mxu0 0
  %614 = vmatpush1.bf16.msra.mxu0 0
  %615 = vmatprep.subr.bf16.mxu0 0
  %616 = vmatpush1.bf16.msra.mxu0 0
  %617 = vmatprep.subr.bf16.mxu0 0
  %618 = vmatpush1.bf16.msra.mxu0 0
  %619 = vmatprep.subr.bf16.mxu0 0
  %620 = vmatpush1.bf16.msra.mxu0 0
  %621 = vmatprep.subr.bf16.mxu0 0
  %622 = vmatpush1.bf16.msra.mxu0 0
  %623 = vmatprep.subr.bf16.mxu0 %v586
  %624 = vmatpush1.bf16.msra.mxu0 %v585
  %625 = vmatprep.subr.bf16.mxu0 0
  %626 = vmatpush2.bf16.msra.mxu0 0
  %627 = vmatprep.subr.bf16.mxu0 0
  %628 = vmatpush2.bf16.msra.mxu0 0
  %629 = vmatprep.subr.bf16.mxu0 0
  %630 = vmatpush2.bf16.msra.mxu0 0
  %631 = vmatprep.subr.bf16.mxu0 0
  %632 = vmatpush2.bf16.msra.mxu0 0
  %633 = vmatprep.subr.bf16.mxu0 0
  %634 = vmatpush2.bf16.msra.mxu0 0
  %635 = vmatprep.subr.bf16.mxu0 0
  %636 = vmatpush2.bf16.msra.mxu0 0
  %637 = vmatprep.subr.bf16.mxu0 0
  %638 = vmatpush2.bf16.msra.mxu0 0
  %639 = vmatprep.subr.bf16.mxu0 0
  %640 = vmatpush2.bf16.msra.mxu0 0
  %641 = vmatprep.mubr.bf16.mxu0 0
  %642 = vmatmul.mubr.bf16.gmra.mxu0 %v607
  %v643 = vpop.f32.mrf.mxu0
  %v644 = vadd.f32 %v594, %v643
  %v645 = vpop.f32.mrf.mxu0
  %v646 = vadd.f32 %v594, %v645
  %v647 = vpop.f32.mrf.mxu0
  %v648 = vadd.f32 %v599, %v647
  %v649 = vpop.f32.mrf.mxu0
  %v650 = vadd.f32 %v599, %v649
  %651 = vdwg.mxu0
  %v652 = vmax.f32 %v644, 0.0
  %v653 = vmax.f32 %v646, 0.0
  %v654 = vmax.f32 %v648, 0.0
  %v655 = vmax.f32 %v650, 0.0
  %v656 = vld [vmem:[%s3] sm:$0xff]
  %v657 = vld [vmem:[%s3 + $0x8] sm:$0xff]
  %659 = vset.pattern.permute.xlu0 4
  %660 = vperm.xlu0 %659, %v656
  %v661 = vpop.permute.xlu0 %660
  %664 = vset.pattern.permute.xlu0 4
  %665 = vperm.xlu0 %664, %v657
  %v666 = vpop.permute.xlu0 %665
  %v668 = vmul.f32 %v652, %v661
  %v669 = vmul.f32 %v653, %v661
  %v670 = vmul.f32 %v654, %v666
  %v671 = vmul.f32 %v655, %v666
  %672 = vrot.lane.b32.xlu0 %v652, 17
  %v673 = vpop.permute.xlu0 %672
  %674 = vrot.lane.b32.xlu0 %v654, 17
  %v675 = vpop.permute.xlu0 %674
  %676 = vrot.lane.b32.xlu0 %v653, 17
  %v677 = vpop.permute.xlu0 %676
  %678 = vrot.lane.b32.xlu0 %v655, 17
  %v679 = vpop.permute.xlu0 %678
  %v680 = vsel %vm137, %v673, %v677
  %v681 = vsel %vm137, %v675, %v679
  %v682 = vsel %vm137, %v677, %v673
  %v683 = vsel %vm137, %v679, %v675
  %684 = vset.pattern.permute.xlu0 0
  %685 = vperm.xlu0 %684, %v656
  %v686 = vpop.permute.xlu0 %685
  %688 = vset.pattern.permute.xlu0 0
  %689 = vperm.xlu0 %688, %v657
  %v690 = vpop.permute.xlu0 %689
  %v692 = vmul.f32 %v682, %v686
  %v693 = vmul.f32 %v680, %v686
  %v694 = vmul.f32 %v683, %v690
  %v695 = vmul.f32 %v681, %v690
  %v696 = vld [vmem:[%s4] ss:$8 sm:$0x3]
  %v698 = vlaneseq
  %v699 = vshrl.u32 %v698, 7
  %v700 = vsub.s32 0, %v699
  %v701 = vrot.slane %v696, %v700
  %v702 = vlaneseq
  %v703 = vshrl.u32 %v702, 7
  %v704 = vsub.s32 1, %v703
  %v705 = vrot.slane %v696, %v704
  %v708 = vmul.f32 %v692, %v701
  %v709 = vmul.f32 %v693, %v705
  %v710 = vmul.f32 %v694, %v701
  %v711 = vmul.f32 %v695, %v705
  %v712 = vadd.f32 %v668, %v708
  %v713 = vadd.f32 %v669, %v709
  %v714 = vadd.f32 %v670, %v710
  %v715 = vadd.f32 %v671, %v711
  %716 = vrot.lane.b32.xlu0 %v652, 16
  %v717 = vpop.permute.xlu0 %716
  %718 = vrot.lane.b32.xlu0 %v654, 16
  %v719 = vpop.permute.xlu0 %718
  %720 = vrot.lane.b32.xlu0 %v653, 16
  %v721 = vpop.permute.xlu0 %720
  %722 = vrot.lane.b32.xlu0 %v655, 16
  %v723 = vpop.permute.xlu0 %722
  %v724 = vsel %vm182, %v717, %v721
  %v725 = vsel %vm182, %v719, %v723
  %v726 = vsel %vm182, %v721, %v717
  %v727 = vsel %vm182, %v723, %v719
  %728 = vset.pattern.permute.xlu0 1
  %729 = vperm.xlu0 %728, %v656
  %v730 = vpop.permute.xlu0 %729
  %732 = vset.pattern.permute.xlu0 1
  %733 = vperm.xlu0 %732, %v657
  %v734 = vpop.permute.xlu0 %733
  %v736 = vmul.f32 %v726, %v730
  %v737 = vmul.f32 %v724, %v730
  %v738 = vmul.f32 %v727, %v734
  %v739 = vmul.f32 %v725, %v734
  %v740 = vld [vmem:[%s199] ss:$8 sm:$0x3]
  %v742 = vlaneseq
  %v743 = vshrl.u32 %v742, 7
  %v744 = vsub.s32 0, %v743
  %v745 = vrot.slane %v740, %v744
  %v746 = vlaneseq
  %v747 = vshrl.u32 %v746, 7
  %v748 = vsub.s32 1, %v747
  %v749 = vrot.slane %v740, %v748
  %v752 = vmul.f32 %v736, %v745
  %v753 = vmul.f32 %v737, %v749
  %v754 = vmul.f32 %v738, %v745
  %v755 = vmul.f32 %v739, %v749
  %v756 = vadd.f32 %v712, %v752
  %v757 = vadd.f32 %v713, %v753
  %v758 = vadd.f32 %v714, %v754
  %v759 = vadd.f32 %v715, %v755
  %760 = vrot.lane.b32.xlu0 %v652, 15
  %v761 = vpop.permute.xlu0 %760
  %762 = vrot.lane.b32.xlu0 %v654, 15
  %v763 = vpop.permute.xlu0 %762
  %764 = vrot.lane.b32.xlu0 %v653, 15
  %v765 = vpop.permute.xlu0 %764
  %766 = vrot.lane.b32.xlu0 %v655, 15
  %v767 = vpop.permute.xlu0 %766
  %v768 = vsel %vm228, %v761, %v765
  %v769 = vsel %vm228, %v763, %v767
  %v770 = vsel %vm228, %v765, %v761
  %v771 = vsel %vm228, %v767, %v763
  %772 = vset.pattern.permute.xlu0 2
  %773 = vperm.xlu0 %772, %v656
  %v774 = vpop.permute.xlu0 %773
  %776 = vset.pattern.permute.xlu0 2
  %777 = vperm.xlu0 %776, %v657
  %v778 = vpop.permute.xlu0 %777
  %v780 = vmul.f32 %v770, %v774
  %v781 = vmul.f32 %v768, %v774
  %v782 = vmul.f32 %v771, %v778
  %v783 = vmul.f32 %v769, %v778
  %v784 = vld [vmem:[%s245] ss:$8 sm:$0x3]
  %v786 = vlaneseq
  %v787 = vshrl.u32 %v786, 7
  %v788 = vsub.s32 0, %v787
  %v789 = vrot.slane %v784, %v788
  %v790 = vlaneseq
  %v791 = vshrl.u32 %v790, 7
  %v792 = vsub.s32 1, %v791
  %v793 = vrot.slane %v784, %v792
  %v796 = vmul.f32 %v780, %v789
  %v797 = vmul.f32 %v781, %v793
  %v798 = vmul.f32 %v782, %v789
  %v799 = vmul.f32 %v783, %v793
  %v800 = vadd.f32 %v756, %v796
  %v801 = vadd.f32 %v757, %v797
  %v802 = vadd.f32 %v758, %v798
  %v803 = vadd.f32 %v759, %v799
  %804 = vrot.lane.b32.xlu0 %v652, 1
  %v805 = vpop.permute.xlu0 %804
  %806 = vrot.lane.b32.xlu0 %v654, 1
  %v807 = vpop.permute.xlu0 %806
  %808 = vrot.lane.b32.xlu0 %v653, 1
  %v809 = vpop.permute.xlu0 %808
  %810 = vrot.lane.b32.xlu0 %v655, 1
  %v811 = vpop.permute.xlu0 %810
  %v812 = vsel %vm274, %v805, %v809
  %v813 = vsel %vm274, %v807, %v811
  %v814 = vsel %vm274, %v809, %v805
  %v815 = vsel %vm274, %v811, %v807
  %816 = vset.pattern.permute.xlu0 3
  %817 = vperm.xlu0 %816, %v656
  %v818 = vpop.permute.xlu0 %817
  %820 = vset.pattern.permute.xlu0 3
  %821 = vperm.xlu0 %820, %v657
  %v822 = vpop.permute.xlu0 %821
  %v824 = vmul.f32 %v814, %v818
  %v825 = vmul.f32 %v812, %v818
  %v826 = vmul.f32 %v815, %v822
  %v827 = vmul.f32 %v813, %v822
  %v828 = vld [vmem:[%s291] ss:$8 sm:$0x3]
  %v830 = vlaneseq
  %v831 = vshrl.u32 %v830, 7
  %v832 = vsub.s32 0, %v831
  %v833 = vrot.slane %v828, %v832
  %v834 = vlaneseq
  %v835 = vshrl.u32 %v834, 7
  %v836 = vsub.s32 1, %v835
  %v837 = vrot.slane %v828, %v836
  %v840 = vmul.f32 %v824, %v833
  %v841 = vmul.f32 %v825, %v837
  %v842 = vmul.f32 %v826, %v833
  %v843 = vmul.f32 %v827, %v837
  %v844 = vadd.f32 %v800, %v840
  %v845 = vadd.f32 %v801, %v841
  %v846 = vadd.f32 %v802, %v842
  %v847 = vadd.f32 %v803, %v843
  %848 = vrot.lane.b32.xlu0 %v652, 127
  %v849 = vpop.permute.xlu0 %848
  %850 = vrot.lane.b32.xlu0 %v654, 127
  %v851 = vpop.permute.xlu0 %850
  %852 = vrot.lane.b32.xlu0 %v653, 127
  %v853 = vpop.permute.xlu0 %852
  %854 = vrot.lane.b32.xlu0 %v655, 127
  %v855 = vpop.permute.xlu0 %854
  %v856 = vsel %vm320, %v849, %v853
  %v857 = vsel %vm320, %v851, %v855
  %v858 = vsel %vm320, %v853, %v849
  %v859 = vsel %vm320, %v855, %v851
  %860 = vset.pattern.permute.xlu0 5
  %861 = vperm.xlu0 %860, %v656
  %v862 = vpop.permute.xlu0 %861
  %864 = vset.pattern.permute.xlu0 5
  %865 = vperm.xlu0 %864, %v657
  %v866 = vpop.permute.xlu0 %865
  %v868 = vmul.f32 %v856, %v862
  %v869 = vmul.f32 %v858, %v862
  %v870 = vmul.f32 %v857, %v866
  %v871 = vmul.f32 %v859, %v866
  %v872 = vld [vmem:[%s337] ss:$8 sm:$0x3]
  %v874 = vlaneseq
  %v875 = vshrl.u32 %v874, 7
  %v876 = vsub.s32 0, %v875
  %v877 = vrot.slane %v872, %v876
  %v878 = vlaneseq
  %v879 = vshrl.u32 %v878, 7
  %v880 = vsub.s32 1, %v879
  %v881 = vrot.slane %v872, %v880
  %v884 = vmul.f32 %v868, %v877
  %v885 = vmul.f32 %v869, %v881
  %v886 = vmul.f32 %v870, %v877
  %v887 = vmul.f32 %v871, %v881
  %v888 = vadd.f32 %v844, %v884
  %v889 = vadd.f32 %v845, %v885
  %v890 = vadd.f32 %v846, %v886
  %v891 = vadd.f32 %v847, %v887
  %892 = vrot.lane.b32.xlu0 %v652, 113
  %v893 = vpop.permute.xlu0 %892
  %894 = vrot.lane.b32.xlu0 %v654, 113
  %v895 = vpop.permute.xlu0 %894
  %896 = vrot.lane.b32.xlu0 %v653, 113
  %v897 = vpop.permute.xlu0 %896
  %898 = vrot.lane.b32.xlu0 %v655, 113
  %v899 = vpop.permute.xlu0 %898
  %v900 = vsel %vm366, %v893, %v897
  %v901 = vsel %vm366, %v895, %v899
  %v902 = vsel %vm366, %v897, %v893
  %v903 = vsel %vm366, %v899, %v895
  %904 = vset.pattern.permute.xlu0 6
  %905 = vperm.xlu0 %904, %v656
  %v906 = vpop.permute.xlu0 %905
  %908 = vset.pattern.permute.xlu0 6
  %909 = vperm.xlu0 %908, %v657
  %v910 = vpop.permute.xlu0 %909
  %v912 = vmul.f32 %v900, %v906
  %v913 = vmul.f32 %v902, %v906
  %v914 = vmul.f32 %v901, %v910
  %v915 = vmul.f32 %v903, %v910
  %v916 = vld [vmem:[%s383] ss:$8 sm:$0x3]
  %v918 = vlaneseq
  %v919 = vshrl.u32 %v918, 7
  %v920 = vsub.s32 0, %v919
  %v921 = vrot.slane %v916, %v920
  %v922 = vlaneseq
  %v923 = vshrl.u32 %v922, 7
  %v924 = vsub.s32 1, %v923
  %v925 = vrot.slane %v916, %v924
  %v928 = vmul.f32 %v912, %v921
  %v929 = vmul.f32 %v913, %v925
  %v930 = vmul.f32 %v914, %v921
  %v931 = vmul.f32 %v915, %v925
  %v932 = vadd.f32 %v888, %v928
  %v933 = vadd.f32 %v889, %v929
  %v934 = vadd.f32 %v890, %v930
  %v935 = vadd.f32 %v891, %v931
  %936 = vrot.lane.b32.xlu0 %v652, 112
  %v937 = vpop.permute.xlu0 %936
  %938 = vrot.lane.b32.xlu0 %v654, 112
  %v939 = vpop.permute.xlu0 %938
  %940 = vrot.lane.b32.xlu0 %v653, 112
  %v941 = vpop.permute.xlu0 %940
  %942 = vrot.lane.b32.xlu0 %v655, 112
  %v943 = vpop.permute.xlu0 %942
  %v944 = vsel %vm412, %v937, %v941
  %v945 = vsel %vm412, %v939, %v943
  %v946 = vsel %vm412, %v941, %v937
  %v947 = vsel %vm412, %v943, %v939
  %948 = vset.pattern.permute.xlu0 7
  %949 = vperm.xlu0 %948, %v656
  %v950 = vpop.permute.xlu0 %949
  %952 = vset.pattern.permute.xlu0 7
  %953 = vperm.xlu0 %952, %v657
  %v954 = vpop.permute.xlu0 %953
  %v956 = vmul.f32 %v944, %v950
  %v957 = vmul.f32 %v946, %v950
  %v958 = vmul.f32 %v945, %v954
  %v959 = vmul.f32 %v947, %v954
  %v960 = vld [vmem:[%s429] ss:$8 sm:$0x3]
  %v962 = vlaneseq
  %v963 = vshrl.u32 %v962, 7
  %v964 = vsub.s32 0, %v963
  %v965 = vrot.slane %v960, %v964
  %v966 = vlaneseq
  %v967 = vshrl.u32 %v966, 7
  %v968 = vsub.s32 1, %v967
  %v969 = vrot.slane %v960, %v968
  %v972 = vmul.f32 %v956, %v965
  %v973 = vmul.f32 %v957, %v969
  %v974 = vmul.f32 %v958, %v965
  %v975 = vmul.f32 %v959, %v969
  %v976 = vadd.f32 %v932, %v972
  %v977 = vadd.f32 %v933, %v973
  %v978 = vadd.f32 %v934, %v974
  %v979 = vadd.f32 %v935, %v975
  %980 = vrot.lane.b32.xlu0 %v652, 111
  %v981 = vpop.permute.xlu0 %980
  %982 = vrot.lane.b32.xlu0 %v654, 111
  %v983 = vpop.permute.xlu0 %982
  %984 = vrot.lane.b32.xlu0 %v653, 111
  %v985 = vpop.permute.xlu0 %984
  %986 = vrot.lane.b32.xlu0 %v655, 111
  %v987 = vpop.permute.xlu0 %986
  %v988 = vsel %vm458, %v981, %v985
  %v989 = vsel %vm458, %v983, %v987
  %v990 = vsel %vm458, %v985, %v981
  %v991 = vsel %vm458, %v987, %v983
  %992 = vset.pattern.permute.xlu0 8
  %993 = vperm.xlu0 %992, %v656
  %v994 = vpop.permute.xlu0 %993
  %996 = vset.pattern.permute.xlu0 8
  %997 = vperm.xlu0 %996, %v657
  %v998 = vpop.permute.xlu0 %997
  %v1000 = vmul.f32 %v988, %v994
  %v1001 = vmul.f32 %v990, %v994
  %v1002 = vmul.f32 %v989, %v998
  %v1003 = vmul.f32 %v991, %v998
  %v1004 = vld [vmem:[%s475] ss:$8 sm:$0x3]
  %v1006 = vlaneseq
  %v1007 = vshrl.u32 %v1006, 7
  %v1008 = vsub.s32 0, %v1007
  %v1009 = vrot.slane %v1004, %v1008
  %v1010 = vlaneseq
  %v1011 = vshrl.u32 %v1010, 7
  %v1012 = vsub.s32 1, %v1011
  %v1013 = vrot.slane %v1004, %v1012
  %v1016 = vmul.f32 %v1000, %v1009
  %v1017 = vmul.f32 %v1001, %v1013
  %v1018 = vmul.f32 %v1002, %v1009
  %v1019 = vmul.f32 %v1003, %v1013
  %v1020 = vadd.f32 %v976, %v1016
  %v1021 = vadd.f32 %v977, %v1017
  %v1022 = vadd.f32 %v978, %v1018
  %v1023 = vadd.f32 %v979, %v1019
  %v1024 = vld [vmem:[%s5] sm:$0xf]
  %v1025 = vld [vmem:[%s5 + $0x4] sm:$0xf]
  %v1026 = vpack.c.bf16 %v1022, %v1020
  %v1027 = vpack.c.bf16 %v1023, %v1021
  %v1028 = vld [vmem:[%s6] sm:$0xff]
  %v1029 = vld [vmem:[%s6 + $0x8] sm:$0xff]
  %1031 = vset.pattern.permute.xlu0 0
  %1032 = vperm.xlu0 %1031, %v1028
  %v1033 = vpop.permute.xlu0 %1032
  %1036 = vset.pattern.permute.xlu0 0
  %1037 = vperm.xlu0 %1036, %v1029
  %v1038 = vpop.permute.xlu0 %1037
  %v1042 = vunpack.c.l.b16 %v1024
  %v1043 = vunpack.c.l.b16 %v1025
  %v1044 = vpack.c.b16 %v1043, %v1042
  %v1046 = vsel %vm60, %v1044, 0
  %1048 = vmatprep.subr.bf16.mxu0 0
  %1049 = vmatpush1.bf16.msra.mxu0 0
  %1050 = vmatprep.subr.bf16.mxu0 0
  %1051 = vmatpush1.bf16.msra.mxu0 0
  %1052 = vmatprep.subr.bf16.mxu0 0
  %1053 = vmatpush1.bf16.msra.mxu0 0
  %1054 = vmatprep.subr.bf16.mxu0 0
  %1055 = vmatpush1.bf16.msra.mxu0 0
  %1056 = vmatprep.subr.bf16.mxu0 0
  %1057 = vmatpush1.bf16.msra.mxu0 0
  %1058 = vmatprep.subr.bf16.mxu0 0
  %1059 = vmatpush1.bf16.msra.mxu0 0
  %1060 = vmatprep.subr.bf16.mxu0 0
  %1061 = vmatpush1.bf16.msra.mxu0 0
  %1062 = vmatprep.subr.bf16.mxu0 %v1027
  %1063 = vmatpush1.bf16.msra.mxu0 %v1026
  %1064 = vmatprep.subr.bf16.mxu0 0
  %1065 = vmatpush2.bf16.msra.mxu0 0
  %1066 = vmatprep.subr.bf16.mxu0 0
  %1067 = vmatpush2.bf16.msra.mxu0 0
  %1068 = vmatprep.subr.bf16.mxu0 0
  %1069 = vmatpush2.bf16.msra.mxu0 0
  %1070 = vmatprep.subr.bf16.mxu0 0
  %1071 = vmatpush2.bf16.msra.mxu0 0
  %1072 = vmatprep.subr.bf16.mxu0 0
  %1073 = vmatpush2.bf16.msra.mxu0 0
  %1074 = vmatprep.subr.bf16.mxu0 0
  %1075 = vmatpush2.bf16.msra.mxu0 0
  %1076 = vmatprep.subr.bf16.mxu0 0
  %1077 = vmatpush2.bf16.msra.mxu0 0
  %1078 = vmatprep.subr.bf16.mxu0 0
  %1079 = vmatpush2.bf16.msra.mxu0 0
  %1080 = vmatprep.mubr.bf16.mxu0 0
  %1081 = vmatmul.mubr.bf16.gmra.mxu0 %v1046
  %v1082 = vpop.f32.mrf.mxu0
  %v1083 = vadd.f32 %v1033, %v1082
  %v1084 = vpop.f32.mrf.mxu0
  %v1085 = vadd.f32 %v1033, %v1084
  %v1086 = vpop.f32.mrf.mxu0
  %v1087 = vadd.f32 %v1038, %v1086
  %v1088 = vpop.f32.mrf.mxu0
  %v1089 = vadd.f32 %v1038, %v1088
  %1090 = vdwg.mxu0
  %v1091 = vmax.f32 %v1083, 0.0
  %v1092 = vmax.f32 %v1085, 0.0
  %v1093 = vmax.f32 %v1087, 0.0
  %v1094 = vmax.f32 %v1089, 0.0
  %1095 = vst [vmem:[%s576 + $0x20] sm:$0xff] %v1091
  %1096 = vst [vmem:[%s576 + $0x28] sm:$0xff] %v1092
  %1097 = vst [vmem:[%s576 + $0x30] sm:$0xff] %v1093
  %1098 = vst [vmem:[%s576 + $0x38] sm:$0xff] %v1094
  // Predicated region
  $region30: #{inverted_residual_stride1.1} parent=0 // pred_check
    _
  $region31: #{inverted_residual_stride1.1} parent=0 // pred_check_branch
    %1100 = sbr.rel (0) target = $region33
  $region32: #{inverted_residual_stride1.1} parent=0 // pred_region
    _
  $region33: #{inverted_residual_stride1.1} parent=0 // pred_fallthru
    _
  // Predicated region
  $region34: #{inverted_residual_stride1.1} parent=0 // pred_check
    _
  $region35: #{inverted_residual_stride1.1} parent=0 // pred_check_branch
    %1102 = sbr.rel (0) target = $region37
  $region36: #{inverted_residual_stride1.1} parent=0 // pred_region
    _
  $region37: #{inverted_residual_stride1.1} parent=0 // pred_fallthru
    _

</llo_original>
